<compile_context>
chip_gen: v6e
topology: v6e:2x2x1
jax: 0.10.0
libtpu: 0.0.40
codegen_flags: <defaults>
</compile_context>

<pallas_src>
import jax
import jax.numpy as jnp
from jax.experimental import pallas as pl
from jax.experimental.pallas import tpu as pltpu


def mlp_kernel(x_ref,
               w1_ref, b1_ref,
               w2_ref, b2_ref,
               w3_ref, b3_ref,
               w4_ref, b4_ref,
               w5_ref, b5_ref,
               w6_ref, b6_ref,
               o_ref):
    x = x_ref[...]                                        # (1, T), lane-dense

    # Layer 1: in_features == 1 -> pure VPU broadcast multiply+add (no MXU).
    h = jnp.maximum(w1_ref[...] * x + b1_ref[...], 0.0)   # (64,1)*(1,T)+(64,1) -> (64,T)

    def dense_relu(h, w_ref, b_ref):
        y = jnp.dot(w_ref[...], h, preferred_element_type=jnp.float32)  # (64,64)@(64,T)
        return jnp.maximum(y + b_ref[...], 0.0)

    h = dense_relu(h, w2_ref, b2_ref)
    h = dense_relu(h, w3_ref, b3_ref)
    h = dense_relu(h, w4_ref, b4_ref)
    h = dense_relu(h, w5_ref, b5_ref)

    # Final layer (64 -> 1): M=1, lane-dense output, no ReLU.
    y = jnp.dot(w6_ref[...], h, preferred_element_type=jnp.float32) + b6_ref[...]
    o_ref[...] = y.astype(o_ref.dtype)                     # (1, T) lane-dense store


def net_with_relu_activation(x, params, tile_n=512):
    """x: (N, 1) float32 (PyTorch nn.Linear convention).
    params: list of (w, b) with w as (out, in), b as (out, 1)."""
    n = x.shape[0]
    # Feature-major layout: batch on the lane (last) axis.
    x_t = x.reshape(1, n)
    grid_n = pl.cdiv(n, tile_n)
    padded_n = grid_n * tile_n
    if padded_n != n:
        x_t = jnp.pad(x_t, ((0, 0), (0, padded_n - n)))

    flat = []
    in_specs = [pl.BlockSpec((1, tile_n), lambda i: (0, i))]  # streamed activation tile
    for w, b in params:
        flat.extend([w, b])
        # Constant index_map -> parameters stay resident in VMEM across the grid.
        in_specs.append(pl.BlockSpec(w.shape, lambda i: (0, 0)))
        in_specs.append(pl.BlockSpec(b.shape, lambda i: (0, 0)))

    hidden = params[1][0].shape[0]
    n_param_elems = sum(int(p.size) for p in flat)
    cost = pl.CostEstimate(
        flops=2 * padded_n * (hidden + 4 * hidden * hidden + hidden),
        transcendentals=0,
        bytes_accessed=4 * (2 * padded_n + n_param_elems),
    )

    out = pl.pallas_call(
        mlp_kernel,
        out_shape=jax.ShapeDtypeStruct((1, padded_n), jnp.float32),
        grid=(grid_n,),
        in_specs=in_specs,
        out_specs=pl.BlockSpec((1, tile_n), lambda i: (0, i)),
        compiler_params=pltpu.CompilerParams(
            dimension_semantics=("parallel",),
            vmem_limit_bytes=32 * 1024 * 1024,
        ),
        cost_estimate=cost,
    )(x_t, *flat)

    return out[0, :n].reshape(n, 1)


def init_params(key):
    """Deterministic init mimicking PyTorch nn.Linear default, stored as
    w: (out, in), b: (out, 1)."""
    layer_dims = [(1, 64), (64, 64), (64, 64), (64, 64), (64, 64), (64, 1)]
    params = []
    for (fan_in, fan_out) in layer_dims:
        key, kw, kb = jax.random.split(key, 3)
        bound = 1.0 / (fan_in ** 0.5)
        w = jax.random.uniform(kw, (fan_out, fan_in), jnp.float32, -bound, bound)
        b = jax.random.uniform(kb, (fan_out, 1), jnp.float32, -bound, bound)
        params.append((w, b))
    return params


def reference(x, params):
    h = x
    for i, (w, b) in enumerate(params):
        h = h @ w.T + b.T            # (N,in)@(in,out) + (1,out)
        if i < len(params) - 1:
            h = jnp.maximum(h, 0.0)
    return h


if __name__ == "__main__":
    key = jax.random.PRNGKey(0)
    key, kx = jax.random.split(key)
    x = jax.random.normal(kx, (8, 1), dtype=jnp.float32)   # batch=8, in_features=1
    params = init_params(key)

    out = net_with_relu_activation(x, params)
    out = jax.block_until_ready(out)

    ref = reference(x, params)
    assert out.shape == (8, 1)
    assert jnp.allclose(out, ref, atol=1e-5, rtol=1e-5), (out, ref)
    print("KERNEL_OK")
</pallas_src>

<mosaic_0001>
module attributes {stable_mosaic.version = 11 : i64} {
  func.func @mlp_kernel(%arg0: i32, %arg1: memref<1x512xf32, #tpu.memory_space<vmem>>, %arg2: memref<64x1xf32, #tpu.memory_space<vmem>>, %arg3: memref<64x1xf32, #tpu.memory_space<vmem>>, %arg4: memref<64x64xf32, #tpu.memory_space<vmem>>, %arg5: memref<64x1xf32, #tpu.memory_space<vmem>>, %arg6: memref<64x64xf32, #tpu.memory_space<vmem>>, %arg7: memref<64x1xf32, #tpu.memory_space<vmem>>, %arg8: memref<64x64xf32, #tpu.memory_space<vmem>>, %arg9: memref<64x1xf32, #tpu.memory_space<vmem>>, %arg10: memref<64x64xf32, #tpu.memory_space<vmem>>, %arg11: memref<64x1xf32, #tpu.memory_space<vmem>>, %arg12: memref<1x64xf32, #tpu.memory_space<vmem>>, %arg13: memref<1x1xf32, #tpu.memory_space<vmem>>, %arg14: memref<1x512xf32, #tpu.memory_space<vmem>>) attributes {dimension_semantics = [#tpu.dimension_semantics<parallel>], iteration_bounds = array<i64: 1>, scalar_prefetch = 0 : i64, scratch_operands = 0 : i64, tpu.core_type = #tpu.core_type<tc>, window_params = [{transform_indices = @transform_0, window_bounds = array<i64: 1, 512>}, {pipeline_mode = #tpu.pipeline_mode<synchronous>, transform_indices = @transform_1, window_bounds = array<i64: 64, 1>}, {pipeline_mode = #tpu.pipeline_mode<synchronous>, transform_indices = @transform_2, window_bounds = array<i64: 64, 1>}, {pipeline_mode = #tpu.pipeline_mode<synchronous>, transform_indices = @transform_3, window_bounds = array<i64: 64, 64>}, {pipeline_mode = #tpu.pipeline_mode<synchronous>, transform_indices = @transform_4, window_bounds = array<i64: 64, 1>}, {pipeline_mode = #tpu.pipeline_mode<synchronous>, transform_indices = @transform_5, window_bounds = array<i64: 64, 64>}, {pipeline_mode = #tpu.pipeline_mode<synchronous>, transform_indices = @transform_6, window_bounds = array<i64: 64, 1>}, {pipeline_mode = #tpu.pipeline_mode<synchronous>, transform_indices = @transform_7, window_bounds = array<i64: 64, 64>}, {pipeline_mode = #tpu.pipeline_mode<synchronous>, transform_indices = @transform_8, window_bounds = array<i64: 64, 1>}, {pipeline_mode = #tpu.pipeline_mode<synchronous>, transform_indices = @transform_9, window_bounds = array<i64: 64, 64>}, {pipeline_mode = #tpu.pipeline_mode<synchronous>, transform_indices = @transform_10, window_bounds = array<i64: 64, 1>}, {pipeline_mode = #tpu.pipeline_mode<synchronous>, transform_indices = @transform_11, window_bounds = array<i64: 1, 64>}, {pipeline_mode = #tpu.pipeline_mode<synchronous>, transform_indices = @transform_12, window_bounds = array<i64: 1, 1>}, {transform_indices = @transform_13, window_bounds = array<i64: 1, 512>}]} {
    %c0 = arith.constant 0 : index
    %c0_0 = arith.constant 0 : index
    %0 = vector.load %arg1[%c0, %c0_0] : memref<1x512xf32, #tpu.memory_space<vmem>>, vector<1x512xf32>
    %c0_1 = arith.constant 0 : index
    %c0_2 = arith.constant 0 : index
    %1 = vector.load %arg2[%c0_1, %c0_2] : memref<64x1xf32, #tpu.memory_space<vmem>>, vector<64x1xf32>
    %2 = vector.broadcast %1 : vector<64x1xf32> to vector<64x512xf32>
    %3 = vector.broadcast %0 : vector<1x512xf32> to vector<64x512xf32>
    %4 = arith.mulf %2, %3 : vector<64x512xf32>
    %c0_3 = arith.constant 0 : index
    %c0_4 = arith.constant 0 : index
    %5 = vector.load %arg3[%c0_3, %c0_4] : memref<64x1xf32, #tpu.memory_space<vmem>>, vector<64x1xf32>
    %6 = vector.broadcast %5 : vector<64x1xf32> to vector<64x512xf32>
    %7 = arith.addf %4, %6 : vector<64x512xf32>
    %cst = arith.constant 0.000000e+00 : f32
    %8 = vector.broadcast %cst : f32 to vector<64x512xf32>
    %9 = arith.maximumf %7, %8 : vector<64x512xf32>
    %c0_5 = arith.constant 0 : index
    %c0_6 = arith.constant 0 : index
    %10 = vector.load %arg4[%c0_5, %c0_6] : memref<64x64xf32, #tpu.memory_space<vmem>>, vector<64x64xf32>
    %cst_7 = arith.constant dense<0.000000e+00> : vector<64x512xf32>
    %11 = tpu.matmul %10, %9, %cst_7 {dimension_numbers = #tpu.dot_dimension_numbers<[1], [0], [0], [1], [0, 0, 1, 1], [], []>} : vector<64x64xf32>, vector<64x512xf32>, vector<64x512xf32> -> vector<64x512xf32>
    %c0_8 = arith.constant 0 : index
    %c0_9 = arith.constant 0 : index
    %12 = vector.load %arg5[%c0_8, %c0_9] : memref<64x1xf32, #tpu.memory_space<vmem>>, vector<64x1xf32>
    %13 = vector.broadcast %12 : vector<64x1xf32> to vector<64x512xf32>
    %14 = arith.addf %11, %13 : vector<64x512xf32>
    %cst_10 = arith.constant 0.000000e+00 : f32
    %15 = vector.broadcast %cst_10 : f32 to vector<64x512xf32>
    %16 = arith.maximumf %14, %15 : vector<64x512xf32>
    %c0_11 = arith.constant 0 : index
    %c0_12 = arith.constant 0 : index
    %17 = vector.load %arg6[%c0_11, %c0_12] : memref<64x64xf32, #tpu.memory_space<vmem>>, vector<64x64xf32>
    %cst_13 = arith.constant dense<0.000000e+00> : vector<64x512xf32>
    %18 = tpu.matmul %17, %16, %cst_13 {dimension_numbers = #tpu.dot_dimension_numbers<[1], [0], [0], [1], [0, 0, 1, 1], [], []>} : vector<64x64xf32>, vector<64x512xf32>, vector<64x512xf32> -> vector<64x512xf32>
    %c0_14 = arith.constant 0 : index
    %c0_15 = arith.constant 0 : index
    %19 = vector.load %arg7[%c0_14, %c0_15] : memref<64x1xf32, #tpu.memory_space<vmem>>, vector<64x1xf32>
    %20 = vector.broadcast %19 : vector<64x1xf32> to vector<64x512xf32>
    %21 = arith.addf %18, %20 : vector<64x512xf32>
    %cst_16 = arith.constant 0.000000e+00 : f32
    %22 = vector.broadcast %cst_16 : f32 to vector<64x512xf32>
    %23 = arith.maximumf %21, %22 : vector<64x512xf32>
    %c0_17 = arith.constant 0 : index
    %c0_18 = arith.constant 0 : index
    %24 = vector.load %arg8[%c0_17, %c0_18] : memref<64x64xf32, #tpu.memory_space<vmem>>, vector<64x64xf32>
    %cst_19 = arith.constant dense<0.000000e+00> : vector<64x512xf32>
    %25 = tpu.matmul %24, %23, %cst_19 {dimension_numbers = #tpu.dot_dimension_numbers<[1], [0], [0], [1], [0, 0, 1, 1], [], []>} : vector<64x64xf32>, vector<64x512xf32>, vector<64x512xf32> -> vector<64x512xf32>
    %c0_20 = arith.constant 0 : index
    %c0_21 = arith.constant 0 : index
    %26 = vector.load %arg9[%c0_20, %c0_21] : memref<64x1xf32, #tpu.memory_space<vmem>>, vector<64x1xf32>
    %27 = vector.broadcast %26 : vector<64x1xf32> to vector<64x512xf32>
    %28 = arith.addf %25, %27 : vector<64x512xf32>
    %cst_22 = arith.constant 0.000000e+00 : f32
    %29 = vector.broadcast %cst_22 : f32 to vector<64x512xf32>
    %30 = arith.maximumf %28, %29 : vector<64x512xf32>
    %c0_23 = arith.constant 0 : index
    %c0_24 = arith.constant 0 : index
    %31 = vector.load %arg10[%c0_23, %c0_24] : memref<64x64xf32, #tpu.memory_space<vmem>>, vector<64x64xf32>
    %cst_25 = arith.constant dense<0.000000e+00> : vector<64x512xf32>
    %32 = tpu.matmul %31, %30, %cst_25 {dimension_numbers = #tpu.dot_dimension_numbers<[1], [0], [0], [1], [0, 0, 1, 1], [], []>} : vector<64x64xf32>, vector<64x512xf32>, vector<64x512xf32> -> vector<64x512xf32>
    %c0_26 = arith.constant 0 : index
    %c0_27 = arith.constant 0 : index
    %33 = vector.load %arg11[%c0_26, %c0_27] : memref<64x1xf32, #tpu.memory_space<vmem>>, vector<64x1xf32>
    %34 = vector.broadcast %33 : vector<64x1xf32> to vector<64x512xf32>
    %35 = arith.addf %32, %34 : vector<64x512xf32>
    %cst_28 = arith.constant 0.000000e+00 : f32
    %36 = vector.broadcast %cst_28 : f32 to vector<64x512xf32>
    %37 = arith.maximumf %35, %36 : vector<64x512xf32>
    %c0_29 = arith.constant 0 : index
    %c0_30 = arith.constant 0 : index
    %38 = vector.load %arg12[%c0_29, %c0_30] : memref<1x64xf32, #tpu.memory_space<vmem>>, vector<1x64xf32>
    %cst_31 = arith.constant dense<0.000000e+00> : vector<1x512xf32>
    %39 = tpu.matmul %38, %37, %cst_31 {dimension_numbers = #tpu.dot_dimension_numbers<[1], [0], [0], [1], [0, 0, 1, 1], [], []>} : vector<1x64xf32>, vector<64x512xf32>, vector<1x512xf32> -> vector<1x512xf32>
    %c0_32 = arith.constant 0 : index
    %c0_33 = arith.constant 0 : index
    %40 = vector.load %arg13[%c0_32, %c0_33] : memref<1x1xf32, #tpu.memory_space<vmem>>, vector<1x1xf32>
    %41 = vector.broadcast %40 : vector<1x1xf32> to vector<1x512xf32>
    %42 = arith.addf %39, %41 : vector<1x512xf32>
    %c0_34 = arith.constant 0 : index
    %c0_35 = arith.constant 0 : index
    %43 = vector.load %arg14[%c0_34, %c0_35] : memref<1x512xf32, #tpu.memory_space<vmem>>, vector<1x512xf32>
    tpu.vector_store %arg14[%c0_34, %c0_35], %42 {strides = array<i32>} : memref<1x512xf32, #tpu.memory_space<vmem>>, vector<1x512xf32>,
    return
  }
  func.func @transform_0(%arg0: i32) -> (i32, i32) {
    %c0_i32 = arith.constant 0 : i32
    %c0_i32_0 = arith.constant 0 : i32
    return %c0_i32, %arg0 : i32, i32
  }
  func.func @transform_1(%arg0: i32) -> (i32, i32) {
    %c0_i32 = arith.constant 0 : i32
    %c0_i32_0 = arith.constant 0 : i32
    %c0_i32_1 = arith.constant 0 : i32
    return %c0_i32, %c0_i32_0 : i32, i32
  }
  func.func @transform_2(%arg0: i32) -> (i32, i32) {
    %c0_i32 = arith.constant 0 : i32
    %c0_i32_0 = arith.constant 0 : i32
    %c0_i32_1 = arith.constant 0 : i32
    return %c0_i32, %c0_i32_0 : i32, i32
  }
  func.func @transform_3(%arg0: i32) -> (i32, i32) {
    %c0_i32 = arith.constant 0 : i32
    %c0_i32_0 = arith.constant 0 : i32
    %c0_i32_1 = arith.constant 0 : i32
    return %c0_i32, %c0_i32_0 : i32, i32
  }
  func.func @transform_4(%arg0: i32) -> (i32, i32) {
    %c0_i32 = arith.constant 0 : i32
    %c0_i32_0 = arith.constant 0 : i32
    %c0_i32_1 = arith.constant 0 : i32
    return %c0_i32, %c0_i32_0 : i32, i32
  }
  func.func @transform_5(%arg0: i32) -> (i32, i32) {
    %c0_i32 = arith.constant 0 : i32
    %c0_i32_0 = arith.constant 0 : i32
    %c0_i32_1 = arith.constant 0 : i32
    return %c0_i32, %c0_i32_0 : i32, i32
  }
  func.func @transform_6(%arg0: i32) -> (i32, i32) {
    %c0_i32 = arith.constant 0 : i32
    %c0_i32_0 = arith.constant 0 : i32
    %c0_i32_1 = arith.constant 0 : i32
    return %c0_i32, %c0_i32_0 : i32, i32
  }
  func.func @transform_7(%arg0: i32) -> (i32, i32) {
    %c0_i32 = arith.constant 0 : i32
    %c0_i32_0 = arith.constant 0 : i32
    %c0_i32_1 = arith.constant 0 : i32
    return %c0_i32, %c0_i32_0 : i32, i32
  }
  func.func @transform_8(%arg0: i32) -> (i32, i32) {
    %c0_i32 = arith.constant 0 : i32
    %c0_i32_0 = arith.constant 0 : i32
    %c0_i32_1 = arith.constant 0 : i32
    return %c0_i32, %c0_i32_0 : i32, i32
  }
  func.func @transform_9(%arg0: i32) -> (i32, i32) {
    %c0_i32 = arith.constant 0 : i32
    %c0_i32_0 = arith.constant 0 : i32
    %c0_i32_1 = arith.constant 0 : i32
    return %c0_i32, %c0_i32_0 : i32, i32
  }
  func.func @transform_10(%arg0: i32) -> (i32, i32) {
    %c0_i32 = arith.constant 0 : i32
    %c0_i32_0 = arith.constant 0 : i32
    %c0_i32_1 = arith.constant 0 : i32
    return %c0_i32, %c0_i32_0 : i32, i32
  }
  func.func @transform_11(%arg0: i32) -> (i32, i32) {
    %c0_i32 = arith.constant 0 : i32
    %c0_i32_0 = arith.constant 0 : i32
    %c0_i32_1 = arith.constant 0 : i32
    return %c0_i32, %c0_i32_0 : i32, i32
  }
  func.func @transform_12(%arg0: i32) -> (i32, i32) {
    %c0_i32 = arith.constant 0 : i32
    %c0_i32_0 = arith.constant 0 : i32
    %c0_i32_1 = arith.constant 0 : i32
    return %c0_i32, %c0_i32_0 : i32, i32
  }
  func.func @transform_13(%arg0: i32) -> (i32, i32) {
    %c0_i32 = arith.constant 0 : i32
    %c0_i32_0 = arith.constant 0 : i32
    return %c0_i32, %arg0 : i32, i32
  }
}

</mosaic_0001>

<llo_original>
// kernel: tpu_custom_call.1
$region0: #{tpu_custom_call.1}
  #allocation0 [shape = 'u32[]', space=smem, size = 0x4, offset = 0x4, fixed_abs, tag = 'smem constant byte address 0x4 - core index']
  #allocation1 [shape = 'u32[144,128]{1,0:T(1,128)}', space=vmem, size = 0x12000, scoped, tag = 'internal scratch']
  #allocation2 [shape = 'f32[1,1]{1,0:T(1,128)S(1)}', space=vmem, size = 0x200, scoped, tag = 'scoped memory for tpu_custom_call.1']
  %s0 = inlined_call_operand.vmem [shape: f32[1,512], index: 0, kind: input, shape index: {}]
  %s1 = inlined_call_operand.vmem [shape: f32[64,1], index: 1, kind: input, shape index: {}]
  %s2 = inlined_call_operand.vmem [shape: f32[64,1], index: 2, kind: input, shape index: {}]
  %s3 = inlined_call_operand.vmem [shape: f32[64,64], index: 3, kind: input, shape index: {}]
  %s4 = inlined_call_operand.vmem [shape: f32[64,1], index: 4, kind: input, shape index: {}]
  %s5 = inlined_call_operand.vmem [shape: f32[64,64], index: 5, kind: input, shape index: {}]
  %s6 = inlined_call_operand.vmem [shape: f32[64,1], index: 6, kind: input, shape index: {}]
  %s7 = inlined_call_operand.vmem [shape: f32[64,64], index: 7, kind: input, shape index: {}]
  %s8 = inlined_call_operand.vmem [shape: f32[64,1], index: 8, kind: input, shape index: {}]
  %s9 = inlined_call_operand.vmem [shape: f32[64,64], index: 9, kind: input, shape index: {}]
  %s10 = inlined_call_operand.vmem [shape: f32[64,1], index: 10, kind: input, shape index: {}]
  %s11 = inlined_call_operand.vmem [shape: f32[1,64], index: 11, kind: input, shape index: {}]
  %s12 = inlined_call_operand.<no memory space> [shape: f32[1,1], index: 12, kind: input, shape index: {}]
  %s13 = inlined_call_operand.hbm [shape: f32[1,512], index: 13, kind: output, shape index: {}]
  %s14 = sld [smem:[#allocation0]]
  $region62: #{tpu_custom_call.1} parent=0
    _
  %s16 = ssub.s32 1, %s14
  %s17 = scalar_select 0, %s16, %s14
  %v18 = vstv %s12
  %19 = vst [vmem:[#allocation2] sm:$0x1] %v18
  $region1: #{tpu_custom_call.1} parent=0
    #allocation3 [shape = 'u8[2048]{0}', space=vmem, size = 0x800, scoped, tag = 'output window, operand 0, single buffered']
    #allocation4 [shape = 's32[1]{0}', space=sflag, size = 0x4, scoped, tag = 'scoped memory for tpu_custom_call.1']
    %20 = vsyncpa [#allocation4], 0
    // Predicated region
    $region2: #{tpu_custom_call.1} parent=1 // pred_check
      _
    $region3: #{tpu_custom_call.1} parent=1 // pred_check_branch
      %22 = sbr.rel (0) target = $region5
    $region4: #{tpu_custom_call.1} parent=1 // pred_region
      _
    $region5: #{tpu_custom_call.1} parent=1 // pred_fallthru
      _
    // Predicated region
    $region6: #{tpu_custom_call.1} parent=1 // pred_check
      _
    $region7: #{tpu_custom_call.1} parent=1 // pred_check_branch
      %24 = sbr.rel (0) target = $region9
    $region8: #{tpu_custom_call.1} parent=1 // pred_region
      _
    $region9: #{tpu_custom_call.1} parent=1 // pred_fallthru
      _
    // Predicated region
    $region10: #{tpu_custom_call.1} parent=1 // pred_check
      _
    $region11: #{tpu_custom_call.1} parent=1 // pred_check_branch
      %26 = sbr.rel (0) target = $region13
    $region12: #{tpu_custom_call.1} parent=1 // pred_region
      _
    $region13: #{tpu_custom_call.1} parent=1 // pred_fallthru
      _
    // Predicated region
    $region14: #{tpu_custom_call.1} parent=1 // pred_check
      _
    $region15: #{tpu_custom_call.1} parent=1 // pred_check_branch
      %28 = sbr.rel (0) target = $region17
    $region16: #{tpu_custom_call.1} parent=1 // pred_region
      _
    $region17: #{tpu_custom_call.1} parent=1 // pred_fallthru
      _
    // Predicated region
    $region18: #{tpu_custom_call.1} parent=1 // pred_check
      _
    $region19: #{tpu_custom_call.1} parent=1 // pred_check_branch
      %30 = sbr.rel (0) target = $region21
    $region20: #{tpu_custom_call.1} parent=1 // pred_region
      _
    $region21: #{tpu_custom_call.1} parent=1 // pred_fallthru
      _
    // Predicated region
    $region22: #{tpu_custom_call.1} parent=1 // pred_check
      _
    $region23: #{tpu_custom_call.1} parent=1 // pred_check_branch
      %32 = sbr.rel (0) target = $region25
    $region24: #{tpu_custom_call.1} parent=1 // pred_region
      _
    $region25: #{tpu_custom_call.1} parent=1 // pred_fallthru
      _
    // Predicated region
    $region26: #{tpu_custom_call.1} parent=1 // pred_check
      _
    $region27: #{tpu_custom_call.1} parent=1 // pred_check_branch
      %34 = sbr.rel (0) target = $region29
    $region28: #{tpu_custom_call.1} parent=1 // pred_region
      _
    $region29: #{tpu_custom_call.1} parent=1 // pred_fallthru
      _
    // Predicated region
    $region30: #{tpu_custom_call.1} parent=1 // pred_check
      _
    $region31: #{tpu_custom_call.1} parent=1 // pred_check_branch
      %36 = sbr.rel (0) target = $region33
    $region32: #{tpu_custom_call.1} parent=1 // pred_region
      _
    $region33: #{tpu_custom_call.1} parent=1 // pred_fallthru
      _
    // Predicated region
    $region34: #{tpu_custom_call.1} parent=1 // pred_check
      _
    $region35: #{tpu_custom_call.1} parent=1 // pred_check_branch
      %38 = sbr.rel (0) target = $region37
    $region36: #{tpu_custom_call.1} parent=1 // pred_region
      _
    $region37: #{tpu_custom_call.1} parent=1 // pred_fallthru
      _
    // Predicated region
    $region38: #{tpu_custom_call.1} parent=1 // pred_check
      _
    $region39: #{tpu_custom_call.1} parent=1 // pred_check_branch
      %40 = sbr.rel (0) target = $region41
    $region40: #{tpu_custom_call.1} parent=1 // pred_region
      _
    $region41: #{tpu_custom_call.1} parent=1 // pred_fallthru
      _
    // Predicated region
    $region42: #{tpu_custom_call.1} parent=1 // pred_check
      _
    $region43: #{tpu_custom_call.1} parent=1 // pred_check_branch
      %42 = sbr.rel (0) target = $region45
    $region44: #{tpu_custom_call.1} parent=1 // pred_region
      _
    $region45: #{tpu_custom_call.1} parent=1 // pred_fallthru
      _
    // Predicated region
    $region46: #{tpu_custom_call.1} parent=1 // pred_check
      _
    $region47: #{tpu_custom_call.1} parent=1 // pred_check_branch
      %44 = sbr.rel (0) target = $region49
    $region48: #{tpu_custom_call.1} parent=1 // pred_region
      _
    $region49: #{tpu_custom_call.1} parent=1 // pred_fallthru
      _
    // Predicated region
    $region50: #{tpu_custom_call.1} parent=1 // pred_check
      _
    $region51: #{tpu_custom_call.1} parent=1 // pred_check_branch
      %46 = sbr.rel (0) target = $region53
    $region52: #{tpu_custom_call.1} parent=1 // pred_region
      _
    $region53: #{tpu_custom_call.1} parent=1 // pred_fallthru
      _
    %v47 = vld [vmem:[%s0] sm:$0xf]
    %v48 = vld [vmem:[%s1] sm:$0xff]
    %v49 = vld [vmem:[%s1 + $0x8] sm:$0xff]
    %v50 = vld [vmem:[%s1 + $0x10] sm:$0xff]
    %v51 = vld [vmem:[%s1 + $0x18] sm:$0xff]
    %v52 = vld [vmem:[%s1 + $0x20] sm:$0xff]
    %v53 = vld [vmem:[%s1 + $0x28] sm:$0xff]
    %v54 = vld [vmem:[%s1 + $0x30] sm:$0xff]
    %v55 = vld [vmem:[%s1 + $0x38] sm:$0xff]
    %57 = vset.pattern.permute.xlu0 0
    %58 = vperm.xlu0 %57, %v48
    %v59 = vpop.permute.xlu0 %58
    %62 = vset.pattern.permute.xlu0 0
    %63 = vperm.xlu0 %62, %v49
    %v64 = vpop.permute.xlu0 %63
    %67 = vset.pattern.permute.xlu0 0
    %68 = vperm.xlu0 %67, %v50
    %v69 = vpop.permute.xlu0 %68
    %72 = vset.pattern.permute.xlu0 0
    %73 = vperm.xlu0 %72, %v51
    %v74 = vpop.permute.xlu0 %73
    %77 = vset.pattern.permute.xlu0 0
    %78 = vperm.xlu0 %77, %v52
    %v79 = vpop.permute.xlu0 %78
    %82 = vset.pattern.permute.xlu0 0
    %83 = vperm.xlu0 %82, %v53
    %v84 = vpop.permute.xlu0 %83
    %87 = vset.pattern.permute.xlu0 0
    %88 = vperm.xlu0 %87, %v54
    %v89 = vpop.permute.xlu0 %88
    %92 = vset.pattern.permute.xlu0 0
    %93 = vperm.xlu0 %92, %v55
    %v94 = vpop.permute.xlu0 %93
    %v97 = vlaneseq
    %v98 = vshrl.u32 %v97, 7
    %v99 = vsub.s32 0, %v98
    %v100 = vrot.slane %v47, %v99
    %v101 = vlaneseq
    %v102 = vshrl.u32 %v101, 7
    %v103 = vsub.s32 1, %v102
    %v104 = vrot.slane %v47, %v103
    %v105 = vlaneseq
    %v106 = vshrl.u32 %v105, 7
    %v107 = vsub.s32 2, %v106
    %v108 = vrot.slane %v47, %v107
    %v109 = vlaneseq
    %v110 = vshrl.u32 %v109, 7
    %v111 = vsub.s32 3, %v110
    %v112 = vrot.slane %v47, %v111
    %v117 = vmul.f32 %v59, %v100
    %v118 = vmul.f32 %v59, %v104
    %v119 = vmul.f32 %v59, %v108
    %v120 = vmul.f32 %v59, %v112
    %v121 = vmul.f32 %v64, %v100
    %v122 = vmul.f32 %v64, %v104
    %v123 = vmul.f32 %v64, %v108
    %v124 = vmul.f32 %v64, %v112
    %v125 = vmul.f32 %v69, %v100
    %v126 = vmul.f32 %v69, %v104
    %v127 = vmul.f32 %v69, %v108
    %v128 = vmul.f32 %v69, %v112
    %v129 = vmul.f32 %v74, %v100
    %v130 = vmul.f32 %v74, %v104
    %v131 = vmul.f32 %v74, %v108
    %v132 = vmul.f32 %v74, %v112
    %v133 = vmul.f32 %v79, %v100
    %v134 = vmul.f32 %v79, %v104
    %v135 = vmul.f32 %v79, %v108
    %v136 = vmul.f32 %v79, %v112
    %v137 = vmul.f32 %v84, %v100
    %v138 = vmul.f32 %v84, %v104
    %v139 = vmul.f32 %v84, %v108
    %v140 = vmul.f32 %v84, %v112
    %v141 = vmul.f32 %v89, %v100
    %v142 = vmul.f32 %v89, %v104
    %v143 = vmul.f32 %v89, %v108
    %v144 = vmul.f32 %v89, %v112
    %v145 = vmul.f32 %v94, %v100
    %v146 = vmul.f32 %v94, %v104
    %v147 = vmul.f32 %v94, %v108
    %v148 = vmul.f32 %v94, %v112
    %v149 = vld [vmem:[%s2] sm:$0xff]
    %v150 = vld [vmem:[%s2 + $0x8] sm:$0xff]
    %v151 = vld [vmem:[%s2 + $0x10] sm:$0xff]
    %v152 = vld [vmem:[%s2 + $0x18] sm:$0xff]
    %v153 = vld [vmem:[%s2 + $0x20] sm:$0xff]
    %v154 = vld [vmem:[%s2 + $0x28] sm:$0xff]
    %v155 = vld [vmem:[%s2 + $0x30] sm:$0xff]
    %v156 = vld [vmem:[%s2 + $0x38] sm:$0xff]
    %158 = vset.pattern.permute.xlu0 0
    %159 = vperm.xlu0 %158, %v149
    %v160 = vpop.permute.xlu0 %159
    %163 = vset.pattern.permute.xlu0 0
    %164 = vperm.xlu0 %163, %v150
    %v165 = vpop.permute.xlu0 %164
    %168 = vset.pattern.permute.xlu0 0
    %169 = vperm.xlu0 %168, %v151
    %v170 = vpop.permute.xlu0 %169
    %173 = vset.pattern.permute.xlu0 0
    %174 = vperm.xlu0 %173, %v152
    %v175 = vpop.permute.xlu0 %174
    %178 = vset.pattern.permute.xlu0 0
    %179 = vperm.xlu0 %178, %v153
    %v180 = vpop.permute.xlu0 %179
    %183 = vset.pattern.permute.xlu0 0
    %184 = vperm.xlu0 %183, %v154
    %v185 = vpop.permute.xlu0 %184
    %188 = vset.pattern.permute.xlu0 0
    %189 = vperm.xlu0 %188, %v155
    %v190 = vpop.permute.xlu0 %189
    %193 = vset.pattern.permute.xlu0 0
    %194 = vperm.xlu0 %193, %v156
    %v195 = vpop.permute.xlu0 %194
    %v197 = vadd.f32 %v117, %v160
    %v198 = vadd.f32 %v118, %v160
    %v199 = vadd.f32 %v119, %v160
    %v200 = vadd.f32 %v120, %v160
    %v201 = vadd.f32 %v121, %v165
    %v202 = vadd.f32 %v122, %v165
    %v203 = vadd.f32 %v123, %v165
    %v204 = vadd.f32 %v124, %v165
    %v205 = vadd.f32 %v125, %v170
    %v206 = vadd.f32 %v126, %v170
    %v207 = vadd.f32 %v127, %v170
    %v208 = vadd.f32 %v128, %v170
    %v209 = vadd.f32 %v129, %v175
    %v210 = vadd.f32 %v130, %v175
    %v211 = vadd.f32 %v131, %v175
    %v212 = vadd.f32 %v132, %v175
    %v213 = vadd.f32 %v133, %v180
    %v214 = vadd.f32 %v134, %v180
    %v215 = vadd.f32 %v135, %v180
    %v216 = vadd.f32 %v136, %v180
    %v217 = vadd.f32 %v137, %v185
    %v218 = vadd.f32 %v138, %v185
    %v219 = vadd.f32 %v139, %v185
    %v220 = vadd.f32 %v140, %v185
    %v221 = vadd.f32 %v141, %v190
    %v222 = vadd.f32 %v142, %v190
    %v223 = vadd.f32 %v143, %v190
    %v224 = vadd.f32 %v144, %v190
    %v225 = vadd.f32 %v145, %v195
    %v226 = vadd.f32 %v146, %v195
    %v227 = vadd.f32 %v147, %v195
    %v228 = vadd.f32 %v148, %v195
    %v229 = vmax.f32 %v197, 0.0
    %v230 = vmax.f32 %v198, 0.0
    %v231 = vmax.f32 %v199, 0.0
    %v232 = vmax.f32 %v200, 0.0
    %v233 = vmax.f32 %v201, 0.0
    %v234 = vmax.f32 %v202, 0.0
    %v235 = vmax.f32 %v203, 0.0
    %v236 = vmax.f32 %v204, 0.0
    %v237 = vmax.f32 %v205, 0.0
    %v238 = vmax.f32 %v206, 0.0
    %v239 = vmax.f32 %v207, 0.0
    %v240 = vmax.f32 %v208, 0.0
    %v241 = vmax.f32 %v209, 0.0
    %v242 = vmax.f32 %v210, 0.0
    %v243 = vmax.f32 %v211, 0.0
    %v244 = vmax.f32 %v212, 0.0
    %v245 = vmax.f32 %v213, 0.0
    %v246 = vmax.f32 %v214, 0.0
    %v247 = vmax.f32 %v215, 0.0
    %v248 = vmax.f32 %v216, 0.0
    %v249 = vmax.f32 %v217, 0.0
    %v250 = vmax.f32 %v218, 0.0
    %v251 = vmax.f32 %v219, 0.0
    %v252 = vmax.f32 %v220, 0.0
    %v253 = vmax.f32 %v221, 0.0
    %v254 = vmax.f32 %v222, 0.0
    %v255 = vmax.f32 %v223, 0.0
    %v256 = vmax.f32 %v224, 0.0
    %v257 = vmax.f32 %v225, 0.0
    %v258 = vmax.f32 %v226, 0.0
    %v259 = vmax.f32 %v227, 0.0
    %v260 = vmax.f32 %v228, 0.0
    %v261 = vld [vmem:[%s3] sm:$0xff]
    %v262 = vld [vmem:[%s3 + $0x8] sm:$0xff]
    %v263 = vld [vmem:[%s3 + $0x10] sm:$0xff]
    %v264 = vld [vmem:[%s3 + $0x18] sm:$0xff]
    %v265 = vld [vmem:[%s3 + $0x20] sm:$0xff]
    %v266 = vld [vmem:[%s3 + $0x28] sm:$0xff]
    %v267 = vld [vmem:[%s3 + $0x30] sm:$0xff]
    %v268 = vld [vmem:[%s3 + $0x38] sm:$0xff]
    %v269 = vld [vmem:[%s4] sm:$0xff]
    %v270 = vld [vmem:[%s4 + $0x8] sm:$0xff]
    %v271 = vld [vmem:[%s4 + $0x10] sm:$0xff]
    %v272 = vld [vmem:[%s4 + $0x18] sm:$0xff]
    %v273 = vld [vmem:[%s4 + $0x20] sm:$0xff]
    %v274 = vld [vmem:[%s4 + $0x28] sm:$0xff]
    %v275 = vld [vmem:[%s4 + $0x30] sm:$0xff]
    %v276 = vld [vmem:[%s4 + $0x38] sm:$0xff]
    %278 = vset.pattern.permute.xlu0 0
    %279 = vperm.xlu0 %278, %v269
    %v280 = vpop.permute.xlu0 %279
    %283 = vset.pattern.permute.xlu0 0
    %284 = vperm.xlu0 %283, %v270
    %v285 = vpop.permute.xlu0 %284
    %288 = vset.pattern.permute.xlu0 0
    %289 = vperm.xlu0 %288, %v271
    %v290 = vpop.permute.xlu0 %289
    %293 = vset.pattern.permute.xlu0 0
    %294 = vperm.xlu0 %293, %v272
    %v295 = vpop.permute.xlu0 %294
    %298 = vset.pattern.permute.xlu0 0
    %299 = vperm.xlu0 %298, %v273
    %v300 = vpop.permute.xlu0 %299
    %303 = vset.pattern.permute.xlu0 0
    %304 = vperm.xlu0 %303, %v274
    %v305 = vpop.permute.xlu0 %304
    %308 = vset.pattern.permute.xlu0 0
    %309 = vperm.xlu0 %308, %v275
    %v310 = vpop.permute.xlu0 %309
    %313 = vset.pattern.permute.xlu0 0
    %314 = vperm.xlu0 %313, %v276
    %v315 = vpop.permute.xlu0 %314
    %vm317 = vcmask 523264
    %v319 = vsel %vm317, %v261, 0
    %v322 = vsel %vm317, %v262, 0
    %v325 = vsel %vm317, %v263, 0
    %v328 = vsel %vm317, %v264, 0
    %v331 = vsel %vm317, %v265, 0
    %v334 = vsel %vm317, %v266, 0
    %v337 = vsel %vm317, %v267, 0
    %v340 = vsel %vm317, %v268, 0
    %342 = vmatprep.subr.mxu0 0.0
    %343 = vmatpush1.msra.mxu0 0.0
    %344 = vmatprep.subr.mxu0 0.0
    %345 = vmatpush1.msra.mxu0 0.0
    %346 = vmatprep.subr.mxu0 0.0
    %347 = vmatpush1.msra.mxu0 0.0
    %348 = vmatprep.subr.mxu0 0.0
    %349 = vmatpush1.msra.mxu0 0.0
    %350 = vmatprep.subr.mxu0 0.0
    %351 = vmatpush1.msra.mxu0 0.0
    %352 = vmatprep.subr.mxu0 0.0
    %353 = vmatpush1.msra.mxu0 0.0
    %354 = vmatprep.subr.mxu0 0.0
    %355 = vmatpush1.msra.mxu0 0.0
    %356 = vmatprep.subr.mxu0 0.0
    %357 = vmatpush1.msra.mxu0 0.0
    %358 = vmatprep.subr.mxu0 %v258
    %359 = vmatpush1.msra.mxu0 %v257
    %360 = vmatprep.subr.mxu0 %v254
    %361 = vmatpush1.msra.mxu0 %v253
    %362 = vmatprep.subr.mxu0 %v250
    %363 = vmatpush1.msra.mxu0 %v249
    %364 = vmatprep.subr.mxu0 %v246
    %365 = vmatpush1.msra.mxu0 %v245
    %366 = vmatprep.subr.mxu0 %v242
    %367 = vmatpush1.msra.mxu0 %v241
    %368 = vmatprep.subr.mxu0 %v238
    %369 = vmatpush1.msra.mxu0 %v237
    %370 = vmatprep.subr.mxu0 %v234
    %371 = vmatpush1.msra.mxu0 %v233
    %372 = vmatprep.subr.mxu0 %v230
    %373 = vmatpush1.msra.mxu0 %v229
    %374 = vmatprep.subr.mxu0 0.0
    %375 = vmatpush2.msra.mxu0 0.0
    %376 = vmatprep.subr.mxu0 0.0
    %377 = vmatpush2.msra.mxu0 0.0
    %378 = vmatprep.subr.mxu0 0.0
    %379 = vmatpush2.msra.mxu0 0.0
    %380 = vmatprep.subr.mxu0 0.0
    %381 = vmatpush2.msra.mxu0 0.0
    %382 = vmatprep.subr.mxu0 0.0
    %383 = vmatpush2.msra.mxu0 0.0
    %384 = vmatprep.subr.mxu0 0.0
    %385 = vmatpush2.msra.mxu0 0.0
    %386 = vmatprep.subr.mxu0 0.0
    %387 = vmatpush2.msra.mxu0 0.0
    %388 = vmatprep.subr.mxu0 0.0
    %389 = vmatpush2.msra.mxu0 0.0
    %390 = vmatprep.subr.mxu0 0.0
    %391 = vmatpush2.msra.mxu0 0.0
    %392 = vmatprep.subr.mxu0 0.0
    %393 = vmatpush2.msra.mxu0 0.0
    %394 = vmatprep.subr.mxu0 0.0
    %395 = vmatpush2.msra.mxu0 0.0
    %396 = vmatprep.subr.mxu0 0.0
    %397 = vmatpush2.msra.mxu0 0.0
    %398 = vmatprep.subr.mxu0 0.0
    %399 = vmatpush2.msra.mxu0 0.0
    %400 = vmatprep.subr.mxu0 0.0
    %401 = vmatpush2.msra.mxu0 0.0
    %402 = vmatprep.subr.mxu0 0.0
    %403 = vmatpush2.msra.mxu0 0.0
    %404 = vmatprep.subr.mxu0 0.0
    %405 = vmatpush2.msra.mxu0 0.0
    %406 = vmatprep.mubr.f32.mxu0 0.0
    %407 = vmatmul.mubr.f32.gmra.mxu0 %v319
    %v408 = vpop.f32.mrf.mxu0
    %v409 = vadd.f32 %v280, %v408
    %v410 = vpop.f32.mrf.mxu0
    %v411 = vadd.f32 %v280, %v410
    %412 = vmatprep.mubr.f32.mxu0 0.0
    %413 = vmatmul.mubr.f32.gmra.mxu0 %v322
    %v414 = vpop.f32.mrf.mxu0
    %v415 = vadd.f32 %v285, %v414
    %v416 = vpop.f32.mrf.mxu0
    %v417 = vadd.f32 %v285, %v416
    %418 = vmatprep.mubr.f32.mxu0 0.0
    %419 = vmatmul.mubr.f32.gmra.mxu0 %v325
    %v420 = vpop.f32.mrf.mxu0
    %v421 = vadd.f32 %v290, %v420
    %v422 = vpop.f32.mrf.mxu0
    %v423 = vadd.f32 %v290, %v422
    %424 = vmatprep.mubr.f32.mxu0 0.0
    %425 = vmatmul.mubr.f32.gmra.mxu0 %v328
    %v426 = vpop.f32.mrf.mxu0
    %v427 = vadd.f32 %v295, %v426
    %v428 = vpop.f32.mrf.mxu0
    %v429 = vadd.f32 %v295, %v428
    %430 = vmatprep.mubr.f32.mxu0 0.0
    %431 = vmatmul.mubr.f32.gmra.mxu0 %v331
    %v432 = vpop.f32.mrf.mxu0
    %v433 = vadd.f32 %v300, %v432
    %v434 = vpop.f32.mrf.mxu0
    %v435 = vadd.f32 %v300, %v434
    %436 = vmatprep.mubr.f32.mxu0 0.0
    %437 = vmatmul.mubr.f32.gmra.mxu0 %v334
    %v438 = vpop.f32.mrf.mxu0
    %v439 = vadd.f32 %v305, %v438
    %v440 = vpop.f32.mrf.mxu0
    %v441 = vadd.f32 %v305, %v440
    %442 = vmatprep.mubr.f32.mxu0 0.0
    %443 = vmatmul.mubr.f32.gmra.mxu0 %v337
    %v444 = vpop.f32.mrf.mxu0
    %v445 = vadd.f32 %v310, %v444
    %v446 = vpop.f32.mrf.mxu0
    %v447 = vadd.f32 %v310, %v446
    %448 = vmatprep.mubr.f32.mxu0 0.0
    %449 = vmatmul.mubr.f32.gmra.mxu0 %v340
    %v450 = vpop.f32.mrf.mxu0
    %v451 = vadd.f32 %v315, %v450
    %v452 = vpop.f32.mrf.mxu0
    %v453 = vadd.f32 %v315, %v452
    %454 = vdwg.mxu0
    %455 = vmatprep.subr.mxu0 0.0
    %456 = vmatpush1.msra.mxu0 0.0
    %457 = vmatprep.subr.mxu0 0.0
    %458 = vmatpush1.msra.mxu0 0.0
    %459 = vmatprep.subr.mxu0 0.0
    %460 = vmatpush1.msra.mxu0 0.0
    %461 = vmatprep.subr.mxu0 0.0
    %462 = vmatpush1.msra.mxu0 0.0
    %463 = vmatprep.subr.mxu0 0.0
    %464 = vmatpush1.msra.mxu0 0.0
    %465 = vmatprep.subr.mxu0 0.0
    %466 = vmatpush1.msra.mxu0 0.0
    %467 = vmatprep.subr.mxu0 0.0
    %468 = vmatpush1.msra.mxu0 0.0
    %469 = vmatprep.subr.mxu0 0.0
    %470 = vmatpush1.msra.mxu0 0.0
    %471 = vmatprep.subr.mxu0 %v260
    %472 = vmatpush1.msra.mxu0 %v259
    %473 = vmatprep.subr.mxu0 %v256
    %474 = vmatpush1.msra.mxu0 %v255
    %475 = vmatprep.subr.mxu0 %v252
    %476 = vmatpush1.msra.mxu0 %v251
    %477 = vmatprep.subr.mxu0 %v248
    %478 = vmatpush1.msra.mxu0 %v247
    %479 = vmatprep.subr.mxu0 %v244
    %480 = vmatpush1.msra.mxu0 %v243
    %481 = vmatprep.subr.mxu0 %v240
    %482 = vmatpush1.msra.mxu0 %v239
    %483 = vmatprep.subr.mxu0 %v236
    %484 = vmatpush1.msra.mxu0 %v235
    %485 = vmatprep.subr.mxu0 %v232
    %486 = vmatpush1.msra.mxu0 %v231
    %487 = vmatprep.subr.mxu0 0.0
    %488 = vmatpush2.msra.mxu0 0.0
    %489 = vmatprep.subr.mxu0 0.0
    %490 = vmatpush2.msra.mxu0 0.0
    %491 = vmatprep.subr.mxu0 0.0
    %492 = vmatpush2.msra.mxu0 0.0
    %493 = vmatprep.subr.mxu0 0.0
    %494 = vmatpush2.msra.mxu0 0.0
    %495 = vmatprep.subr.mxu0 0.0
    %496 = vmatpush2.msra.mxu0 0.0
    %497 = vmatprep.subr.mxu0 0.0
    %498 = vmatpush2.msra.mxu0 0.0
    %499 = vmatprep.subr.mxu0 0.0
    %500 = vmatpush2.msra.mxu0 0.0
    %501 = vmatprep.subr.mxu0 0.0
    %502 = vmatpush2.msra.mxu0 0.0
    %503 = vmatprep.subr.mxu0 0.0
    %504 = vmatpush2.msra.mxu0 0.0
    %505 = vmatprep.subr.mxu0 0.0
    %506 = vmatpush2.msra.mxu0 0.0
    %507 = vmatprep.subr.mxu0 0.0
    %508 = vmatpush2.msra.mxu0 0.0
    %509 = vmatprep.subr.mxu0 0.0
    %510 = vmatpush2.msra.mxu0 0.0
    %511 = vmatprep.subr.mxu0 0.0
    %512 = vmatpush2.msra.mxu0 0.0
    %513 = vmatprep.subr.mxu0 0.0
    %514 = vmatpush2.msra.mxu0 0.0
    %515 = vmatprep.subr.mxu0 0.0
    %516 = vmatpush2.msra.mxu0 0.0
    %517 = vmatprep.subr.mxu0 0.0
    %518 = vmatpush2.msra.mxu0 0.0
    %519 = vmatprep.mubr.f32.mxu0 0.0
    %520 = vmatmul.mubr.f32.gmra.mxu0 %v319
    %v521 = vpop.f32.mrf.mxu0
    %v522 = vadd.f32 %v280, %v521
    %v523 = vpop.f32.mrf.mxu0
    %v524 = vadd.f32 %v280, %v523
    %525 = vmatprep.mubr.f32.mxu0 0.0
    %526 = vmatmul.mubr.f32.gmra.mxu0 %v322
    %v527 = vpop.f32.mrf.mxu0
    %v528 = vadd.f32 %v285, %v527
    %v529 = vpop.f32.mrf.mxu0
    %v530 = vadd.f32 %v285, %v529
    %531 = vmatprep.mubr.f32.mxu0 0.0
    %532 = vmatmul.mubr.f32.gmra.mxu0 %v325
    %v533 = vpop.f32.mrf.mxu0
    %v534 = vadd.f32 %v290, %v533
    %v535 = vpop.f32.mrf.mxu0
    %v536 = vadd.f32 %v290, %v535
    %537 = vmatprep.mubr.f32.mxu0 0.0
    %538 = vmatmul.mubr.f32.gmra.mxu0 %v328
    %v539 = vpop.f32.mrf.mxu0
    %v540 = vadd.f32 %v295, %v539
    %v541 = vpop.f32.mrf.mxu0
    %v542 = vadd.f32 %v295, %v541
    %543 = vmatprep.mubr.f32.mxu0 0.0
    %544 = vmatmul.mubr.f32.gmra.mxu0 %v331
    %v545 = vpop.f32.mrf.mxu0
    %v546 = vadd.f32 %v300, %v545
    %v547 = vpop.f32.mrf.mxu0
    %v548 = vadd.f32 %v300, %v547
    %549 = vmatprep.mubr.f32.mxu0 0.0
    %550 = vmatmul.mubr.f32.gmra.mxu0 %v334
    %v551 = vpop.f32.mrf.mxu0
    %v552 = vadd.f32 %v305, %v551
    %v553 = vpop.f32.mrf.mxu0
    %v554 = vadd.f32 %v305, %v553
    %555 = vmatprep.mubr.f32.mxu0 0.0
    %556 = vmatmul.mubr.f32.gmra.mxu0 %v337
    %v557 = vpop.f32.mrf.mxu0
    %v558 = vadd.f32 %v310, %v557
    %v559 = vpop.f32.mrf.mxu0
    %v560 = vadd.f32 %v310, %v559
    %561 = vmatprep.mubr.f32.mxu0 0.0
    %562 = vmatmul.mubr.f32.gmra.mxu0 %v340
    %v563 = vpop.f32.mrf.mxu0
    %v564 = vadd.f32 %v315, %v563
    %v565 = vpop.f32.mrf.mxu0
    %v566 = vadd.f32 %v315, %v565
    %567 = vdwg.mxu0
    %v568 = vmax.f32 %v409, 0.0
    %v569 = vmax.f32 %v411, 0.0
    %v570 = vmax.f32 %v522, 0.0
    %v571 = vmax.f32 %v524, 0.0
    %v572 = vmax.f32 %v415, 0.0
    %v573 = vmax.f32 %v417, 0.0
    %v574 = vmax.f32 %v528, 0.0
    %v575 = vmax.f32 %v530, 0.0
    %v576 = vmax.f32 %v421, 0.0
    %v577 = vmax.f32 %v423, 0.0
    %v578 = vmax.f32 %v534, 0.0
    %v579 = vmax.f32 %v536, 0.0
    %v580 = vmax.f32 %v427, 0.0
    %v581 = vmax.f32 %v429, 0.0
    %v582 = vmax.f32 %v540, 0.0
    %v583 = vmax.f32 %v542, 0.0
    %v584 = vmax.f32 %v433, 0.0
    %v585 = vmax.f32 %v435, 0.0
    %v586 = vmax.f32 %v546, 0.0
    %v587 = vmax.f32 %v548, 0.0
    %v588 = vmax.f32 %v439, 0.0
    %v589 = vmax.f32 %v441, 0.0
    %v590 = vmax.f32 %v552, 0.0
    %v591 = vmax.f32 %v554, 0.0
    %v592 = vmax.f32 %v445, 0.0
    %v593 = vmax.f32 %v447, 0.0
    %v594 = vmax.f32 %v558, 0.0
    %v595 = vmax.f32 %v560, 0.0
    %v596 = vmax.f32 %v451, 0.0
    %v597 = vmax.f32 %v453, 0.0
    %v598 = vmax.f32 %v564, 0.0
    %v599 = vmax.f32 %v566, 0.0
    %v600 = vld [vmem:[%s5] sm:$0xff]
    %v601 = vld [vmem:[%s5 + $0x8] sm:$0xff]
    %v602 = vld [vmem:[%s5 + $0x10] sm:$0xff]
    %v603 = vld [vmem:[%s5 + $0x18] sm:$0xff]
    %v604 = vld [vmem:[%s5 + $0x20] sm:$0xff]
    %v605 = vld [vmem:[%s5 + $0x28] sm:$0xff]
    %v606 = vld [vmem:[%s5 + $0x30] sm:$0xff]
    %v607 = vld [vmem:[%s5 + $0x38] sm:$0xff]
    %v608 = vld [vmem:[%s6] sm:$0xff]
    %v609 = vld [vmem:[%s6 + $0x8] sm:$0xff]
    %v610 = vld [vmem:[%s6 + $0x10] sm:$0xff]
    %v611 = vld [vmem:[%s6 + $0x18] sm:$0xff]
    %v612 = vld [vmem:[%s6 + $0x20] sm:$0xff]
    %v613 = vld [vmem:[%s6 + $0x28] sm:$0xff]
    %v614 = vld [vmem:[%s6 + $0x30] sm:$0xff]
    %v615 = vld [vmem:[%s6 + $0x38] sm:$0xff]
    %617 = vset.pattern.permute.xlu0 0
    %618 = vperm.xlu0 %617, %v608
    %v619 = vpop.permute.xlu0 %618
    %622 = vset.pattern.permute.xlu0 0
    %623 = vperm.xlu0 %622, %v609
    %v624 = vpop.permute.xlu0 %623
    %627 = vset.pattern.permute.xlu0 0
    %628 = vperm.xlu0 %627, %v610
    %v629 = vpop.permute.xlu0 %628
    %632 = vset.pattern.permute.xlu0 0
    %633 = vperm.xlu0 %632, %v611
    %v634 = vpop.permute.xlu0 %633
    %637 = vset.pattern.permute.xlu0 0
    %638 = vperm.xlu0 %637, %v612
    %v639 = vpop.permute.xlu0 %638
    %642 = vset.pattern.permute.xlu0 0
    %643 = vperm.xlu0 %642, %v613
    %v644 = vpop.permute.xlu0 %643
    %647 = vset.pattern.permute.xlu0 0
    %648 = vperm.xlu0 %647, %v614
    %v649 = vpop.permute.xlu0 %648
    %652 = vset.pattern.permute.xlu0 0
    %653 = vperm.xlu0 %652, %v615
    %v654 = vpop.permute.xlu0 %653
    %v657 = vsel %vm317, %v600, 0
    %v660 = vsel %vm317, %v601, 0
    %v663 = vsel %vm317, %v602, 0
    %v666 = vsel %vm317, %v603, 0
    %v669 = vsel %vm317, %v604, 0
    %v672 = vsel %vm317, %v605, 0
    %v675 = vsel %vm317, %v606, 0
    %v678 = vsel %vm317, %v607, 0
    %680 = vmatprep.subr.mxu0 0.0
    %681 = vmatpush1.msra.mxu0 0.0
    %682 = vmatprep.subr.mxu0 0.0
    %683 = vmatpush1.msra.mxu0 0.0
    %684 = vmatprep.subr.mxu0 0.0
    %685 = vmatpush1.msra.mxu0 0.0
    %686 = vmatprep.subr.mxu0 0.0
    %687 = vmatpush1.msra.mxu0 0.0
    %688 = vmatprep.subr.mxu0 0.0
    %689 = vmatpush1.msra.mxu0 0.0
    %690 = vmatprep.subr.mxu0 0.0
    %691 = vmatpush1.msra.mxu0 0.0
    %692 = vmatprep.subr.mxu0 0.0
    %693 = vmatpush1.msra.mxu0 0.0
    %694 = vmatprep.subr.mxu0 0.0
    %695 = vmatpush1.msra.mxu0 0.0
    %696 = vmatprep.subr.mxu0 %v597
    %697 = vmatpush1.msra.mxu0 %v596
    %698 = vmatprep.subr.mxu0 %v593
    %699 = vmatpush1.msra.mxu0 %v592
    %700 = vmatprep.subr.mxu0 %v589
    %701 = vmatpush1.msra.mxu0 %v588
    %702 = vmatprep.subr.mxu0 %v585
    %703 = vmatpush1.msra.mxu0 %v584
    %704 = vmatprep.subr.mxu0 %v581
    %705 = vmatpush1.msra.mxu0 %v580
    %706 = vmatprep.subr.mxu0 %v577
    %707 = vmatpush1.msra.mxu0 %v576
    %708 = vmatprep.subr.mxu0 %v573
    %709 = vmatpush1.msra.mxu0 %v572
    %710 = vmatprep.subr.mxu0 %v569
    %711 = vmatpush1.msra.mxu0 %v568
    %712 = vmatprep.subr.mxu0 0.0
    %713 = vmatpush2.msra.mxu0 0.0
    %714 = vmatprep.subr.mxu0 0.0
    %715 = vmatpush2.msra.mxu0 0.0
    %716 = vmatprep.subr.mxu0 0.0
    %717 = vmatpush2.msra.mxu0 0.0
    %718 = vmatprep.subr.mxu0 0.0
    %719 = vmatpush2.msra.mxu0 0.0
    %720 = vmatprep.subr.mxu0 0.0
    %721 = vmatpush2.msra.mxu0 0.0
    %722 = vmatprep.subr.mxu0 0.0
    %723 = vmatpush2.msra.mxu0 0.0
    %724 = vmatprep.subr.mxu0 0.0
    %725 = vmatpush2.msra.mxu0 0.0
    %726 = vmatprep.subr.mxu0 0.0
    %727 = vmatpush2.msra.mxu0 0.0
    %728 = vmatprep.subr.mxu0 0.0
    %729 = vmatpush2.msra.mxu0 0.0
    %730 = vmatprep.subr.mxu0 0.0
    %731 = vmatpush2.msra.mxu0 0.0
    %732 = vmatprep.subr.mxu0 0.0
    %733 = vmatpush2.msra.mxu0 0.0
    %734 = vmatprep.subr.mxu0 0.0
    %735 = vmatpush2.msra.mxu0 0.0
    %736 = vmatprep.subr.mxu0 0.0
    %737 = vmatpush2.msra.mxu0 0.0
    %738 = vmatprep.subr.mxu0 0.0
    %739 = vmatpush2.msra.mxu0 0.0
    %740 = vmatprep.subr.mxu0 0.0
    %741 = vmatpush2.msra.mxu0 0.0
    %742 = vmatprep.subr.mxu0 0.0
    %743 = vmatpush2.msra.mxu0 0.0
    %744 = vmatprep.mubr.f32.mxu0 0.0
    %745 = vmatmul.mubr.f32.gmra.mxu0 %v657
    %v746 = vpop.f32.mrf.mxu0
    %v747 = vadd.f32 %v619, %v746
    %v748 = vpop.f32.mrf.mxu0
    %v749 = vadd.f32 %v619, %v748
    %750 = vmatprep.mubr.f32.mxu0 0.0
    %751 = vmatmul.mubr.f32.gmra.mxu0 %v660
    %v752 = vpop.f32.mrf.mxu0
    %v753 = vadd.f32 %v624, %v752
    %v754 = vpop.f32.mrf.mxu0
    %v755 = vadd.f32 %v624, %v754
    %756 = vmatprep.mubr.f32.mxu0 0.0
    %757 = vmatmul.mubr.f32.gmra.mxu0 %v663
    %v758 = vpop.f32.mrf.mxu0
    %v759 = vadd.f32 %v629, %v758
    %v760 = vpop.f32.mrf.mxu0
    %v761 = vadd.f32 %v629, %v760
    %762 = vmatprep.mubr.f32.mxu0 0.0
    %763 = vmatmul.mubr.f32.gmra.mxu0 %v666
    %v764 = vpop.f32.mrf.mxu0
    %v765 = vadd.f32 %v634, %v764
    %v766 = vpop.f32.mrf.mxu0
    %v767 = vadd.f32 %v634, %v766
    %768 = vmatprep.mubr.f32.mxu0 0.0
    %769 = vmatmul.mubr.f32.gmra.mxu0 %v669
    %v770 = vpop.f32.mrf.mxu0
    %v771 = vadd.f32 %v639, %v770
    %v772 = vpop.f32.mrf.mxu0
    %v773 = vadd.f32 %v639, %v772
    %774 = vmatprep.mubr.f32.mxu0 0.0
    %775 = vmatmul.mubr.f32.gmra.mxu0 %v672
    %v776 = vpop.f32.mrf.mxu0
    %v777 = vadd.f32 %v644, %v776
    %v778 = vpop.f32.mrf.mxu0
    %v779 = vadd.f32 %v644, %v778
    %780 = vmatprep.mubr.f32.mxu0 0.0
    %781 = vmatmul.mubr.f32.gmra.mxu0 %v675
    %v782 = vpop.f32.mrf.mxu0
    %v783 = vadd.f32 %v649, %v782
    %v784 = vpop.f32.mrf.mxu0
    %v785 = vadd.f32 %v649, %v784
    %786 = vmatprep.mubr.f32.mxu0 0.0
    %787 = vmatmul.mubr.f32.gmra.mxu0 %v678
    %v788 = vpop.f32.mrf.mxu0
    %v789 = vadd.f32 %v654, %v788
    %v790 = vpop.f32.mrf.mxu0
    %v791 = vadd.f32 %v654, %v790
    %792 = vdwg.mxu0
    %793 = vmatprep.subr.mxu0 0.0
    %794 = vmatpush1.msra.mxu0 0.0
    %795 = vmatprep.subr.mxu0 0.0
    %796 = vmatpush1.msra.mxu0 0.0
    %797 = vmatprep.subr.mxu0 0.0
    %798 = vmatpush1.msra.mxu0 0.0
    %799 = vmatprep.subr.mxu0 0.0
    %800 = vmatpush1.msra.mxu0 0.0
    %801 = vmatprep.subr.mxu0 0.0
    %802 = vmatpush1.msra.mxu0 0.0
    %803 = vmatprep.subr.mxu0 0.0
    %804 = vmatpush1.msra.mxu0 0.0
    %805 = vmatprep.subr.mxu0 0.0
    %806 = vmatpush1.msra.mxu0 0.0
    %807 = vmatprep.subr.mxu0 0.0
    %808 = vmatpush1.msra.mxu0 0.0
    %809 = vmatprep.subr.mxu0 %v599
    %810 = vmatpush1.msra.mxu0 %v598
    %811 = vmatprep.subr.mxu0 %v595
    %812 = vmatpush1.msra.mxu0 %v594
    %813 = vmatprep.subr.mxu0 %v591
    %814 = vmatpush1.msra.mxu0 %v590
    %815 = vmatprep.subr.mxu0 %v587
    %816 = vmatpush1.msra.mxu0 %v586
    %817 = vmatprep.subr.mxu0 %v583
    %818 = vmatpush1.msra.mxu0 %v582
    %819 = vmatprep.subr.mxu0 %v579
    %820 = vmatpush1.msra.mxu0 %v578
    %821 = vmatprep.subr.mxu0 %v575
    %822 = vmatpush1.msra.mxu0 %v574
    %823 = vmatprep.subr.mxu0 %v571
    %824 = vmatpush1.msra.mxu0 %v570
    %825 = vmatprep.subr.mxu0 0.0
    %826 = vmatpush2.msra.mxu0 0.0
    %827 = vmatprep.subr.mxu0 0.0
    %828 = vmatpush2.msra.mxu0 0.0
    %829 = vmatprep.subr.mxu0 0.0
    %830 = vmatpush2.msra.mxu0 0.0
    %831 = vmatprep.subr.mxu0 0.0
    %832 = vmatpush2.msra.mxu0 0.0
    %833 = vmatprep.subr.mxu0 0.0
    %834 = vmatpush2.msra.mxu0 0.0
    %835 = vmatprep.subr.mxu0 0.0
    %836 = vmatpush2.msra.mxu0 0.0
    %837 = vmatprep.subr.mxu0 0.0
    %838 = vmatpush2.msra.mxu0 0.0
    %839 = vmatprep.subr.mxu0 0.0
    %840 = vmatpush2.msra.mxu0 0.0
    %841 = vmatprep.subr.mxu0 0.0
    %842 = vmatpush2.msra.mxu0 0.0
    %843 = vmatprep.subr.mxu0 0.0
    %844 = vmatpush2.msra.mxu0 0.0
    %845 = vmatprep.subr.mxu0 0.0
    %846 = vmatpush2.msra.mxu0 0.0
    %847 = vmatprep.subr.mxu0 0.0
    %848 = vmatpush2.msra.mxu0 0.0
    %849 = vmatprep.subr.mxu0 0.0
    %850 = vmatpush2.msra.mxu0 0.0
    %851 = vmatprep.subr.mxu0 0.0
    %852 = vmatpush2.msra.mxu0 0.0
    %853 = vmatprep.subr.mxu0 0.0
    %854 = vmatpush2.msra.mxu0 0.0
    %855 = vmatprep.subr.mxu0 0.0
    %856 = vmatpush2.msra.mxu0 0.0
    %857 = vmatprep.mubr.f32.mxu0 0.0
    %858 = vmatmul.mubr.f32.gmra.mxu0 %v657
    %v859 = vpop.f32.mrf.mxu0
    %v860 = vadd.f32 %v619, %v859
    %v861 = vpop.f32.mrf.mxu0
    %v862 = vadd.f32 %v619, %v861
    %863 = vmatprep.mubr.f32.mxu0 0.0
    %864 = vmatmul.mubr.f32.gmra.mxu0 %v660
    %v865 = vpop.f32.mrf.mxu0
    %v866 = vadd.f32 %v624, %v865
    %v867 = vpop.f32.mrf.mxu0
    %v868 = vadd.f32 %v624, %v867
    %869 = vmatprep.mubr.f32.mxu0 0.0
    %870 = vmatmul.mubr.f32.gmra.mxu0 %v663
    %v871 = vpop.f32.mrf.mxu0
    %v872 = vadd.f32 %v629, %v871
    %v873 = vpop.f32.mrf.mxu0
    %v874 = vadd.f32 %v629, %v873
    %875 = vmatprep.mubr.f32.mxu0 0.0
    %876 = vmatmul.mubr.f32.gmra.mxu0 %v666
    %v877 = vpop.f32.mrf.mxu0
    %v878 = vadd.f32 %v634, %v877
    %v879 = vpop.f32.mrf.mxu0
    %v880 = vadd.f32 %v634, %v879
    %881 = vmatprep.mubr.f32.mxu0 0.0
    %882 = vmatmul.mubr.f32.gmra.mxu0 %v669
    %v883 = vpop.f32.mrf.mxu0
    %v884 = vadd.f32 %v639, %v883
    %v885 = vpop.f32.mrf.mxu0
    %v886 = vadd.f32 %v639, %v885
    %887 = vmatprep.mubr.f32.mxu0 0.0
    %888 = vmatmul.mubr.f32.gmra.mxu0 %v672
    %v889 = vpop.f32.mrf.mxu0
    %v890 = vadd.f32 %v644, %v889
    %v891 = vpop.f32.mrf.mxu0
    %v892 = vadd.f32 %v644, %v891
    %893 = vmatprep.mubr.f32.mxu0 0.0
    %894 = vmatmul.mubr.f32.gmra.mxu0 %v675
    %v895 = vpop.f32.mrf.mxu0
    %v896 = vadd.f32 %v649, %v895
    %v897 = vpop.f32.mrf.mxu0
    %v898 = vadd.f32 %v649, %v897
    %899 = vmatprep.mubr.f32.mxu0 0.0
    %900 = vmatmul.mubr.f32.gmra.mxu0 %v678
    %v901 = vpop.f32.mrf.mxu0
    %v902 = vadd.f32 %v654, %v901
    %v903 = vpop.f32.mrf.mxu0
    %v904 = vadd.f32 %v654, %v903
    %905 = vdwg.mxu0
    %v906 = vmax.f32 %v747, 0.0
    %v907 = vmax.f32 %v749, 0.0
    %v908 = vmax.f32 %v860, 0.0
    %v909 = vmax.f32 %v862, 0.0
    %v910 = vmax.f32 %v753, 0.0
    %v911 = vmax.f32 %v755, 0.0
    %v912 = vmax.f32 %v866, 0.0
    %v913 = vmax.f32 %v868, 0.0
    %v914 = vmax.f32 %v759, 0.0
    %v915 = vmax.f32 %v761, 0.0
    %v916 = vmax.f32 %v872, 0.0
    %v917 = vmax.f32 %v874, 0.0
    %v918 = vmax.f32 %v765, 0.0
    %v919 = vmax.f32 %v767, 0.0
    %v920 = vmax.f32 %v878, 0.0
    %v921 = vmax.f32 %v880, 0.0
    %v922 = vmax.f32 %v771, 0.0
    %v923 = vmax.f32 %v773, 0.0
    %v924 = vmax.f32 %v884, 0.0
    %v925 = vmax.f32 %v886, 0.0
    %v926 = vmax.f32 %v777, 0.0
    %v927 = vmax.f32 %v779, 0.0
    %v928 = vmax.f32 %v890, 0.0
    %v929 = vmax.f32 %v892, 0.0
    %v930 = vmax.f32 %v783, 0.0
    %v931 = vmax.f32 %v785, 0.0
    %v932 = vmax.f32 %v896, 0.0
    %v933 = vmax.f32 %v898, 0.0
    %v934 = vmax.f32 %v789, 0.0
    %v935 = vmax.f32 %v791, 0.0
    %v936 = vmax.f32 %v902, 0.0
    %v937 = vmax.f32 %v904, 0.0
    %v938 = vld [vmem:[%s7] sm:$0xff]
    %v939 = vld [vmem:[%s7 + $0x8] sm:$0xff]
    %v940 = vld [vmem:[%s7 + $0x10] sm:$0xff]
    %v941 = vld [vmem:[%s7 + $0x18] sm:$0xff]
    %v942 = vld [vmem:[%s7 + $0x20] sm:$0xff]
    %v943 = vld [vmem:[%s7 + $0x28] sm:$0xff]
    %v944 = vld [vmem:[%s7 + $0x30] sm:$0xff]
    %v945 = vld [vmem:[%s7 + $0x38] sm:$0xff]
    %v946 = vld [vmem:[%s8] sm:$0xff]
    %v947 = vld [vmem:[%s8 + $0x8] sm:$0xff]
    %v948 = vld [vmem:[%s8 + $0x10] sm:$0xff]
    %v949 = vld [vmem:[%s8 + $0x18] sm:$0xff]
    %v950 = vld [vmem:[%s8 + $0x20] sm:$0xff]
    %v951 = vld [vmem:[%s8 + $0x28] sm:$0xff]
    %v952 = vld [vmem:[%s8 + $0x30] sm:$0xff]
    %v953 = vld [vmem:[%s8 + $0x38] sm:$0xff]
    %955 = vset.pattern.permute.xlu0 0
    %956 = vperm.xlu0 %955, %v946
    %v957 = vpop.permute.xlu0 %956
    %960 = vset.pattern.permute.xlu0 0
    %961 = vperm.xlu0 %960, %v947
    %v962 = vpop.permute.xlu0 %961
    %965 = vset.pattern.permute.xlu0 0
    %966 = vperm.xlu0 %965, %v948
    %v967 = vpop.permute.xlu0 %966
    %970 = vset.pattern.permute.xlu0 0
    %971 = vperm.xlu0 %970, %v949
    %v972 = vpop.permute.xlu0 %971
    %975 = vset.pattern.permute.xlu0 0
    %976 = vperm.xlu0 %975, %v950
    %v977 = vpop.permute.xlu0 %976
    %980 = vset.pattern.permute.xlu0 0
    %981 = vperm.xlu0 %980, %v951
    %v982 = vpop.permute.xlu0 %981
    %985 = vset.pattern.permute.xlu0 0
    %986 = vperm.xlu0 %985, %v952
    %v987 = vpop.permute.xlu0 %986
    %990 = vset.pattern.permute.xlu0 0
    %991 = vperm.xlu0 %990, %v953
    %v992 = vpop.permute.xlu0 %991
    %v995 = vsel %vm317, %v938, 0
    %v998 = vsel %vm317, %v939, 0
    %v1001 = vsel %vm317, %v940, 0
    %v1004 = vsel %vm317, %v941, 0
    %v1007 = vsel %vm317, %v942, 0
    %v1010 = vsel %vm317, %v943, 0
    %v1013 = vsel %vm317, %v944, 0
    %v1016 = vsel %vm317, %v945, 0
    %1018 = vmatprep.subr.mxu0 0.0
    %1019 = vmatpush1.msra.mxu0 0.0
    %1020 = vmatprep.subr.mxu0 0.0
    %1021 = vmatpush1.msra.mxu0 0.0
    %1022 = vmatprep.subr.mxu0 0.0
    %1023 = vmatpush1.msra.mxu0 0.0
    %1024 = vmatprep.subr.mxu0 0.0
    %1025 = vmatpush1.msra.mxu0 0.0
    %1026 = vmatprep.subr.mxu0 0.0
    %1027 = vmatpush1.msra.mxu0 0.0
    %1028 = vmatprep.subr.mxu0 0.0
    %1029 = vmatpush1.msra.mxu0 0.0
    %1030 = vmatprep.subr.mxu0 0.0
    %1031 = vmatpush1.msra.mxu0 0.0
    %1032 = vmatprep.subr.mxu0 0.0
    %1033 = vmatpush1.msra.mxu0 0.0
    %1034 = vmatprep.subr.mxu0 %v935
    %1035 = vmatpush1.msra.mxu0 %v934
    %1036 = vmatprep.subr.mxu0 %v931
    %1037 = vmatpush1.msra.mxu0 %v930
    %1038 = vmatprep.subr.mxu0 %v927
    %1039 = vmatpush1.msra.mxu0 %v926
    %1040 = vmatprep.subr.mxu0 %v923
    %1041 = vmatpush1.msra.mxu0 %v922
    %1042 = vmatprep.subr.mxu0 %v919
    %1043 = vmatpush1.msra.mxu0 %v918
    %1044 = vmatprep.subr.mxu0 %v915
    %1045 = vmatpush1.msra.mxu0 %v914
    %1046 = vmatprep.subr.mxu0 %v911
    %1047 = vmatpush1.msra.mxu0 %v910
    %1048 = vmatprep.subr.mxu0 %v907
    %1049 = vmatpush1.msra.mxu0 %v906
    %1050 = vmatprep.subr.mxu0 0.0
    %1051 = vmatpush2.msra.mxu0 0.0
    %1052 = vmatprep.subr.mxu0 0.0
    %1053 = vmatpush2.msra.mxu0 0.0
    %1054 = vmatprep.subr.mxu0 0.0
    %1055 = vmatpush2.msra.mxu0 0.0
    %1056 = vmatprep.subr.mxu0 0.0
    %1057 = vmatpush2.msra.mxu0 0.0
    %1058 = vmatprep.subr.mxu0 0.0
    %1059 = vmatpush2.msra.mxu0 0.0
    %1060 = vmatprep.subr.mxu0 0.0
    %1061 = vmatpush2.msra.mxu0 0.0
    %1062 = vmatprep.subr.mxu0 0.0
    %1063 = vmatpush2.msra.mxu0 0.0
    %1064 = vmatprep.subr.mxu0 0.0
    %1065 = vmatpush2.msra.mxu0 0.0
    %1066 = vmatprep.subr.mxu0 0.0
    %1067 = vmatpush2.msra.mxu0 0.0
    %1068 = vmatprep.subr.mxu0 0.0
    %1069 = vmatpush2.msra.mxu0 0.0
    %1070 = vmatprep.subr.mxu0 0.0
    %1071 = vmatpush2.msra.mxu0 0.0
    %1072 = vmatprep.subr.mxu0 0.0
    %1073 = vmatpush2.msra.mxu0 0.0
    %1074 = vmatprep.subr.mxu0 0.0
    %1075 = vmatpush2.msra.mxu0 0.0
    %1076 = vmatprep.subr.mxu0 0.0
    %1077 = vmatpush2.msra.mxu0 0.0
    %1078 = vmatprep.subr.mxu0 0.0
    %1079 = vmatpush2.msra.mxu0 0.0
    %1080 = vmatprep.subr.mxu0 0.0
    %1081 = vmatpush2.msra.mxu0 0.0
    %1082 = vmatprep.mubr.f32.mxu0 0.0
    %1083 = vmatmul.mubr.f32.gmra.mxu0 %v995
    %v1084 = vpop.f32.mrf.mxu0
    %v1085 = vadd.f32 %v957, %v1084
    %v1086 = vpop.f32.mrf.mxu0
    %v1087 = vadd.f32 %v957, %v1086
    %1088 = vmatprep.mubr.f32.mxu0 0.0
    %1089 = vmatmul.mubr.f32.gmra.mxu0 %v998
    %v1090 = vpop.f32.mrf.mxu0
    %v1091 = vadd.f32 %v962, %v1090
    %v1092 = vpop.f32.mrf.mxu0
    %v1093 = vadd.f32 %v962, %v1092
    %1094 = vmatprep.mubr.f32.mxu0 0.0
    %1095 = vmatmul.mubr.f32.gmra.mxu0 %v1001
    %v1096 = vpop.f32.mrf.mxu0
    %v1097 = vadd.f32 %v967, %v1096
    %v1098 = vpop.f32.mrf.mxu0
    %v1099 = vadd.f32 %v967, %v1098
    %1100 = vmatprep.mubr.f32.mxu0 0.0
    %1101 = vmatmul.mubr.f32.gmra.mxu0 %v1004
    %v1102 = vpop.f32.mrf.mxu0
    %v1103 = vadd.f32 %v972, %v1102
    %v1104 = vpop.f32.mrf.mxu0
    %v1105 = vadd.f32 %v972, %v1104
    %1106 = vmatprep.mubr.f32.mxu0 0.0
    %1107 = vmatmul.mubr.f32.gmra.mxu0 %v1007
    %v1108 = vpop.f32.mrf.mxu0
    %v1109 = vadd.f32 %v977, %v1108
    %v1110 = vpop.f32.mrf.mxu0
    %v1111 = vadd.f32 %v977, %v1110
    %1112 = vmatprep.mubr.f32.mxu0 0.0
    %1113 = vmatmul.mubr.f32.gmra.mxu0 %v1010
    %v1114 = vpop.f32.mrf.mxu0
    %v1115 = vadd.f32 %v982, %v1114
    %v1116 = vpop.f32.mrf.mxu0
    %v1117 = vadd.f32 %v982, %v1116
    %1118 = vmatprep.mubr.f32.mxu0 0.0
    %1119 = vmatmul.mubr.f32.gmra.mxu0 %v1013
    %v1120 = vpop.f32.mrf.mxu0
    %v1121 = vadd.f32 %v987, %v1120
    %v1122 = vpop.f32.mrf.mxu0
    %v1123 = vadd.f32 %v987, %v1122
    %1124 = vmatprep.mubr.f32.mxu0 0.0
    %1125 = vmatmul.mubr.f32.gmra.mxu0 %v1016
    %v1126 = vpop.f32.mrf.mxu0
    %v1127 = vadd.f32 %v992, %v1126
    %v1128 = vpop.f32.mrf.mxu0
    %v1129 = vadd.f32 %v992, %v1128
    %1130 = vdwg.mxu0
    %1131 = vmatprep.subr.mxu0 0.0
    %1132 = vmatpush1.msra.mxu0 0.0
    %1133 = vmatprep.subr.mxu0 0.0
    %1134 = vmatpush1.msra.mxu0 0.0
    %1135 = vmatprep.subr.mxu0 0.0
    %1136 = vmatpush1.msra.mxu0 0.0
    %1137 = vmatprep.subr.mxu0 0.0
    %1138 = vmatpush1.msra.mxu0 0.0
    %1139 = vmatprep.subr.mxu0 0.0
    %1140 = vmatpush1.msra.mxu0 0.0
    %1141 = vmatprep.subr.mxu0 0.0
    %1142 = vmatpush1.msra.mxu0 0.0
    %1143 = vmatprep.subr.mxu0 0.0
    %1144 = vmatpush1.msra.mxu0 0.0
    %1145 = vmatprep.subr.mxu0 0.0
    %1146 = vmatpush1.msra.mxu0 0.0
    %1147 = vmatprep.subr.mxu0 %v937
    %1148 = vmatpush1.msra.mxu0 %v936
    %1149 = vmatprep.subr.mxu0 %v933
    %1150 = vmatpush1.msra.mxu0 %v932
    %1151 = vmatprep.subr.mxu0 %v929
    %1152 = vmatpush1.msra.mxu0 %v928
    %1153 = vmatprep.subr.mxu0 %v925
    %1154 = vmatpush1.msra.mxu0 %v924
    %1155 = vmatprep.subr.mxu0 %v921
    %1156 = vmatpush1.msra.mxu0 %v920
    %1157 = vmatprep.subr.mxu0 %v917
    %1158 = vmatpush1.msra.mxu0 %v916
    %1159 = vmatprep.subr.mxu0 %v913
    %1160 = vmatpush1.msra.mxu0 %v912
    %1161 = vmatprep.subr.mxu0 %v909
    %1162 = vmatpush1.msra.mxu0 %v908
    %1163 = vmatprep.subr.mxu0 0.0
    %1164 = vmatpush2.msra.mxu0 0.0
    %1165 = vmatprep.subr.mxu0 0.0
    %1166 = vmatpush2.msra.mxu0 0.0
    %1167 = vmatprep.subr.mxu0 0.0
    %1168 = vmatpush2.msra.mxu0 0.0
    %1169 = vmatprep.subr.mxu0 0.0
    %1170 = vmatpush2.msra.mxu0 0.0
    %1171 = vmatprep.subr.mxu0 0.0
    %1172 = vmatpush2.msra.mxu0 0.0
    %1173 = vmatprep.subr.mxu0 0.0
    %1174 = vmatpush2.msra.mxu0 0.0
    %1175 = vmatprep.subr.mxu0 0.0
    %1176 = vmatpush2.msra.mxu0 0.0
    %1177 = vmatprep.subr.mxu0 0.0
    %1178 = vmatpush2.msra.mxu0 0.0
    %1179 = vmatprep.subr.mxu0 0.0
    %1180 = vmatpush2.msra.mxu0 0.0
    %1181 = vmatprep.subr.mxu0 0.0
    %1182 = vmatpush2.msra.mxu0 0.0
    %1183 = vmatprep.subr.mxu0 0.0
    %1184 = vmatpush2.msra.mxu0 0.0
    %1185 = vmatprep.subr.mxu0 0.0
    %1186 = vmatpush2.msra.mxu0 0.0
    %1187 = vmatprep.subr.mxu0 0.0
    %1188 = vmatpush2.msra.mxu0 0.0
    %1189 = vmatprep.subr.mxu0 0.0
    %1190 = vmatpush2.msra.mxu0 0.0
    %1191 = vmatprep.subr.mxu0 0.0
    %1192 = vmatpush2.msra.mxu0 0.0
    %1193 = vmatprep.subr.mxu0 0.0
    %1194 = vmatpush2.msra.mxu0 0.0
    %1195 = vmatprep.mubr.f32.mxu0 0.0
    %1196 = vmatmul.mubr.f32.gmra.mxu0 %v995
    %v1197 = vpop.f32.mrf.mxu0
    %v1198 = vadd.f32 %v957, %v1197
    %v1199 = vpop.f32.mrf.mxu0
    %v1200 = vadd.f32 %v957, %v1199
    %1201 = vmatprep.mubr.f32.mxu0 0.0
    %1202 = vmatmul.mubr.f32.gmra.mxu0 %v998
    %v1203 = vpop.f32.mrf.mxu0
    %v1204 = vadd.f32 %v962, %v1203
    %v1205 = vpop.f32.mrf.mxu0
    %v1206 = vadd.f32 %v962, %v1205
    %1207 = vmatprep.mubr.f32.mxu0 0.0
    %1208 = vmatmul.mubr.f32.gmra.mxu0 %v1001
    %v1209 = vpop.f32.mrf.mxu0
    %v1210 = vadd.f32 %v967, %v1209
    %v1211 = vpop.f32.mrf.mxu0
    %v1212 = vadd.f32 %v967, %v1211
    %1213 = vmatprep.mubr.f32.mxu0 0.0
    %1214 = vmatmul.mubr.f32.gmra.mxu0 %v1004
    %v1215 = vpop.f32.mrf.mxu0
    %v1216 = vadd.f32 %v972, %v1215
    %v1217 = vpop.f32.mrf.mxu0
    %v1218 = vadd.f32 %v972, %v1217
    %1219 = vmatprep.mubr.f32.mxu0 0.0
    %1220 = vmatmul.mubr.f32.gmra.mxu0 %v1007
    %v1221 = vpop.f32.mrf.mxu0
    %v1222 = vadd.f32 %v977, %v1221
    %v1223 = vpop.f32.mrf.mxu0
    %v1224 = vadd.f32 %v977, %v1223
    %1225 = vmatprep.mubr.f32.mxu0 0.0
    %1226 = vmatmul.mubr.f32.gmra.mxu0 %v1010
    %v1227 = vpop.f32.mrf.mxu0
    %v1228 = vadd.f32 %v982, %v1227
    %v1229 = vpop.f32.mrf.mxu0
    %v1230 = vadd.f32 %v982, %v1229
    %1231 = vmatprep.mubr.f32.mxu0 0.0
    %1232 = vmatmul.mubr.f32.gmra.mxu0 %v1013
    %v1233 = vpop.f32.mrf.mxu0
    %v1234 = vadd.f32 %v987, %v1233
    %v1235 = vpop.f32.mrf.mxu0
    %v1236 = vadd.f32 %v987, %v1235
    %1237 = vmatprep.mubr.f32.mxu0 0.0
    %1238 = vmatmul.mubr.f32.gmra.mxu0 %v1016
    %v1239 = vpop.f32.mrf.mxu0
    %v1240 = vadd.f32 %v992, %v1239
    %v1241 = vpop.f32.mrf.mxu0
    %v1242 = vadd.f32 %v992, %v1241
    %1243 = vdwg.mxu0
    %v1244 = vmax.f32 %v1085, 0.0
    %v1245 = vmax.f32 %v1087, 0.0
    %v1246 = vmax.f32 %v1198, 0.0
    %v1247 = vmax.f32 %v1200, 0.0
    %v1248 = vmax.f32 %v1091, 0.0
    %v1249 = vmax.f32 %v1093, 0.0
    %v1250 = vmax.f32 %v1204, 0.0
    %v1251 = vmax.f32 %v1206, 0.0
    %v1252 = vmax.f32 %v1097, 0.0
    %v1253 = vmax.f32 %v1099, 0.0
    %v1254 = vmax.f32 %v1210, 0.0
    %v1255 = vmax.f32 %v1212, 0.0
    %v1256 = vmax.f32 %v1103, 0.0
    %v1257 = vmax.f32 %v1105, 0.0
    %v1258 = vmax.f32 %v1216, 0.0
    %v1259 = vmax.f32 %v1218, 0.0
    %v1260 = vmax.f32 %v1109, 0.0
    %v1261 = vmax.f32 %v1111, 0.0
    %v1262 = vmax.f32 %v1222, 0.0
    %v1263 = vmax.f32 %v1224, 0.0
    %v1264 = vmax.f32 %v1115, 0.0
    %v1265 = vmax.f32 %v1117, 0.0
    %v1266 = vmax.f32 %v1228, 0.0
    %v1267 = vmax.f32 %v1230, 0.0
    %v1268 = vmax.f32 %v1121, 0.0
    %v1269 = vmax.f32 %v1123, 0.0
    %v1270 = vmax.f32 %v1234, 0.0
    %v1271 = vmax.f32 %v1236, 0.0
    %v1272 = vmax.f32 %v1127, 0.0
    %v1273 = vmax.f32 %v1129, 0.0
    %v1274 = vmax.f32 %v1240, 0.0
    %v1275 = vmax.f32 %v1242, 0.0
    %v1276 = vld [vmem:[%s9] sm:$0xff]
    %v1277 = vld [vmem:[%s9 + $0x8] sm:$0xff]
    %v1278 = vld [vmem:[%s9 + $0x10] sm:$0xff]
    %v1279 = vld [vmem:[%s9 + $0x18] sm:$0xff]
    %v1280 = vld [vmem:[%s9 + $0x20] sm:$0xff]
    %v1281 = vld [vmem:[%s9 + $0x28] sm:$0xff]
    %v1282 = vld [vmem:[%s9 + $0x30] sm:$0xff]
    %v1283 = vld [vmem:[%s9 + $0x38] sm:$0xff]
    %v1284 = vld [vmem:[%s10] sm:$0xff]
    %v1285 = vld [vmem:[%s10 + $0x8] sm:$0xff]
    %v1286 = vld [vmem:[%s10 + $0x10] sm:$0xff]
    %v1287 = vld [vmem:[%s10 + $0x18] sm:$0xff]
    %v1288 = vld [vmem:[%s10 + $0x20] sm:$0xff]
    %v1289 = vld [vmem:[%s10 + $0x28] sm:$0xff]
    %v1290 = vld [vmem:[%s10 + $0x30] sm:$0xff]
    %v1291 = vld [vmem:[%s10 + $0x38] sm:$0xff]
    %1293 = vset.pattern.permute.xlu0 0
    %1294 = vperm.xlu0 %1293, %v1284
    %v1295 = vpop.permute.xlu0 %1294
    %1298 = vset.pattern.permute.xlu0 0
    %1299 = vperm.xlu0 %1298, %v1285
    %v1300 = vpop.permute.xlu0 %1299
    %1303 = vset.pattern.permute.xlu0 0
    %1304 = vperm.xlu0 %1303, %v1286
    %v1305 = vpop.permute.xlu0 %1304
    %1308 = vset.pattern.permute.xlu0 0
    %1309 = vperm.xlu0 %1308, %v1287
    %v1310 = vpop.permute.xlu0 %1309
    %1313 = vset.pattern.permute.xlu0 0
    %1314 = vperm.xlu0 %1313, %v1288
    %v1315 = vpop.permute.xlu0 %1314
    %1318 = vset.pattern.permute.xlu0 0
    %1319 = vperm.xlu0 %1318, %v1289
    %v1320 = vpop.permute.xlu0 %1319
    %1323 = vset.pattern.permute.xlu0 0
    %1324 = vperm.xlu0 %1323, %v1290
    %v1325 = vpop.permute.xlu0 %1324
    %1328 = vset.pattern.permute.xlu0 0
    %1329 = vperm.xlu0 %1328, %v1291
    %v1330 = vpop.permute.xlu0 %1329
    %v1333 = vsel %vm317, %v1276, 0
    %v1336 = vsel %vm317, %v1277, 0
    %v1339 = vsel %vm317, %v1278, 0
    %v1342 = vsel %vm317, %v1279, 0
    %v1345 = vsel %vm317, %v1280, 0
    %v1348 = vsel %vm317, %v1281, 0
    %v1351 = vsel %vm317, %v1282, 0
    %v1354 = vsel %vm317, %v1283, 0
    %1356 = vmatprep.subr.mxu0 0.0
    %1357 = vmatpush1.msra.mxu0 0.0
    %1358 = vmatprep.subr.mxu0 0.0
    %1359 = vmatpush1.msra.mxu0 0.0
    %1360 = vmatprep.subr.mxu0 0.0
    %1361 = vmatpush1.msra.mxu0 0.0
    %1362 = vmatprep.subr.mxu0 0.0
    %1363 = vmatpush1.msra.mxu0 0.0
    %1364 = vmatprep.subr.mxu0 0.0
    %1365 = vmatpush1.msra.mxu0 0.0
    %1366 = vmatprep.subr.mxu0 0.0
    %1367 = vmatpush1.msra.mxu0 0.0
    %1368 = vmatprep.subr.mxu0 0.0
    %1369 = vmatpush1.msra.mxu0 0.0
    %1370 = vmatprep.subr.mxu0 0.0
    %1371 = vmatpush1.msra.mxu0 0.0
    %1372 = vmatprep.subr.mxu0 %v1273
    %1373 = vmatpush1.msra.mxu0 %v1272
    %1374 = vmatprep.subr.mxu0 %v1269
    %1375 = vmatpush1.msra.mxu0 %v1268
    %1376 = vmatprep.subr.mxu0 %v1265
    %1377 = vmatpush1.msra.mxu0 %v1264
    %1378 = vmatprep.subr.mxu0 %v1261
    %1379 = vmatpush1.msra.mxu0 %v1260
    %1380 = vmatprep.subr.mxu0 %v1257
    %1381 = vmatpush1.msra.mxu0 %v1256
    %1382 = vmatprep.subr.mxu0 %v1253
    %1383 = vmatpush1.msra.mxu0 %v1252
    %1384 = vmatprep.subr.mxu0 %v1249
    %1385 = vmatpush1.msra.mxu0 %v1248
    %1386 = vmatprep.subr.mxu0 %v1245
    %1387 = vmatpush1.msra.mxu0 %v1244
    %1388 = vmatprep.subr.mxu0 0.0
    %1389 = vmatpush2.msra.mxu0 0.0
    %1390 = vmatprep.subr.mxu0 0.0
    %1391 = vmatpush2.msra.mxu0 0.0
    %1392 = vmatprep.subr.mxu0 0.0
    %1393 = vmatpush2.msra.mxu0 0.0
    %1394 = vmatprep.subr.mxu0 0.0
    %1395 = vmatpush2.msra.mxu0 0.0
    %1396 = vmatprep.subr.mxu0 0.0
    %1397 = vmatpush2.msra.mxu0 0.0
    %1398 = vmatprep.subr.mxu0 0.0
    %1399 = vmatpush2.msra.mxu0 0.0
    %1400 = vmatprep.subr.mxu0 0.0
    %1401 = vmatpush2.msra.mxu0 0.0
    %1402 = vmatprep.subr.mxu0 0.0
    %1403 = vmatpush2.msra.mxu0 0.0
    %1404 = vmatprep.subr.mxu0 0.0
    %1405 = vmatpush2.msra.mxu0 0.0
    %1406 = vmatprep.subr.mxu0 0.0
    %1407 = vmatpush2.msra.mxu0 0.0
    %1408 = vmatprep.subr.mxu0 0.0
    %1409 = vmatpush2.msra.mxu0 0.0
    %1410 = vmatprep.subr.mxu0 0.0
    %1411 = vmatpush2.msra.mxu0 0.0
    %1412 = vmatprep.subr.mxu0 0.0
    %1413 = vmatpush2.msra.mxu0 0.0
    %1414 = vmatprep.subr.mxu0 0.0
    %1415 = vmatpush2.msra.mxu0 0.0
    %1416 = vmatprep.subr.mxu0 0.0
    %1417 = vmatpush2.msra.mxu0 0.0
    %1418 = vmatprep.subr.mxu0 0.0
    %1419 = vmatpush2.msra.mxu0 0.0
    %1420 = vmatprep.mubr.f32.mxu0 0.0
    %1421 = vmatmul.mubr.f32.gmra.mxu0 %v1333
    %v1422 = vpop.f32.mrf.mxu0
    %v1423 = vadd.f32 %v1295, %v1422
    %v1424 = vpop.f32.mrf.mxu0
    %v1425 = vadd.f32 %v1295, %v1424
    %1426 = vmatprep.mubr.f32.mxu0 0.0
    %1427 = vmatmul.mubr.f32.gmra.mxu0 %v1336
    %v1428 = vpop.f32.mrf.mxu0
    %v1429 = vadd.f32 %v1300, %v1428
    %v1430 = vpop.f32.mrf.mxu0
    %v1431 = vadd.f32 %v1300, %v1430
    %1432 = vmatprep.mubr.f32.mxu0 0.0
    %1433 = vmatmul.mubr.f32.gmra.mxu0 %v1339
    %v1434 = vpop.f32.mrf.mxu0
    %v1435 = vadd.f32 %v1305, %v1434
    %v1436 = vpop.f32.mrf.mxu0
    %v1437 = vadd.f32 %v1305, %v1436
    %1438 = vmatprep.mubr.f32.mxu0 0.0
    %1439 = vmatmul.mubr.f32.gmra.mxu0 %v1342
    %v1440 = vpop.f32.mrf.mxu0
    %v1441 = vadd.f32 %v1310, %v1440
    %v1442 = vpop.f32.mrf.mxu0
    %v1443 = vadd.f32 %v1310, %v1442
    %1444 = vmatprep.mubr.f32.mxu0 0.0
    %1445 = vmatmul.mubr.f32.gmra.mxu0 %v1345
    %v1446 = vpop.f32.mrf.mxu0
    %v1447 = vadd.f32 %v1315, %v1446
    %v1448 = vpop.f32.mrf.mxu0
    %v1449 = vadd.f32 %v1315, %v1448
    %1450 = vmatprep.mubr.f32.mxu0 0.0
    %1451 = vmatmul.mubr.f32.gmra.mxu0 %v1348
    %v1452 = vpop.f32.mrf.mxu0
    %v1453 = vadd.f32 %v1320, %v1452
    %v1454 = vpop.f32.mrf.mxu0
    %v1455 = vadd.f32 %v1320, %v1454
    %1456 = vmatprep.mubr.f32.mxu0 0.0
    %1457 = vmatmul.mubr.f32.gmra.mxu0 %v1351
    %v1458 = vpop.f32.mrf.mxu0
    %v1459 = vadd.f32 %v1325, %v1458
    %v1460 = vpop.f32.mrf.mxu0
    %v1461 = vadd.f32 %v1325, %v1460
    %1462 = vmatprep.mubr.f32.mxu0 0.0
    %1463 = vmatmul.mubr.f32.gmra.mxu0 %v1354
    %v1464 = vpop.f32.mrf.mxu0
    %v1465 = vadd.f32 %v1330, %v1464
    %v1466 = vpop.f32.mrf.mxu0
    %v1467 = vadd.f32 %v1330, %v1466
    %1468 = vdwg.mxu0
    %1469 = vmatprep.subr.mxu0 0.0
    %1470 = vmatpush1.msra.mxu0 0.0
    %1471 = vmatprep.subr.mxu0 0.0
    %1472 = vmatpush1.msra.mxu0 0.0
    %1473 = vmatprep.subr.mxu0 0.0
    %1474 = vmatpush1.msra.mxu0 0.0
    %1475 = vmatprep.subr.mxu0 0.0
    %1476 = vmatpush1.msra.mxu0 0.0
    %1477 = vmatprep.subr.mxu0 0.0
    %1478 = vmatpush1.msra.mxu0 0.0
    %1479 = vmatprep.subr.mxu0 0.0
    %1480 = vmatpush1.msra.mxu0 0.0
    %1481 = vmatprep.subr.mxu0 0.0
    %1482 = vmatpush1.msra.mxu0 0.0
    %1483 = vmatprep.subr.mxu0 0.0
    %1484 = vmatpush1.msra.mxu0 0.0
    %1485 = vmatprep.subr.mxu0 %v1275
    %1486 = vmatpush1.msra.mxu0 %v1274
    %1487 = vmatprep.subr.mxu0 %v1271
    %1488 = vmatpush1.msra.mxu0 %v1270
    %1489 = vmatprep.subr.mxu0 %v1267
    %1490 = vmatpush1.msra.mxu0 %v1266
    %1491 = vmatprep.subr.mxu0 %v1263
    %1492 = vmatpush1.msra.mxu0 %v1262
    %1493 = vmatprep.subr.mxu0 %v1259
    %1494 = vmatpush1.msra.mxu0 %v1258
    %1495 = vmatprep.subr.mxu0 %v1255
    %1496 = vmatpush1.msra.mxu0 %v1254
    %1497 = vmatprep.subr.mxu0 %v1251
    %1498 = vmatpush1.msra.mxu0 %v1250
    %1499 = vmatprep.subr.mxu0 %v1247
    %1500 = vmatpush1.msra.mxu0 %v1246
    %1501 = vmatprep.subr.mxu0 0.0
    %1502 = vmatpush2.msra.mxu0 0.0
    %1503 = vmatprep.subr.mxu0 0.0
    %1504 = vmatpush2.msra.mxu0 0.0
    %1505 = vmatprep.subr.mxu0 0.0
    %1506 = vmatpush2.msra.mxu0 0.0
    %1507 = vmatprep.subr.mxu0 0.0
    %1508 = vmatpush2.msra.mxu0 0.0
    %1509 = vmatprep.subr.mxu0 0.0
    %1510 = vmatpush2.msra.mxu0 0.0
    %1511 = vmatprep.subr.mxu0 0.0
    %1512 = vmatpush2.msra.mxu0 0.0
    %1513 = vmatprep.subr.mxu0 0.0
    %1514 = vmatpush2.msra.mxu0 0.0
    %1515 = vmatprep.subr.mxu0 0.0
    %1516 = vmatpush2.msra.mxu0 0.0
    %1517 = vmatprep.subr.mxu0 0.0
    %1518 = vmatpush2.msra.mxu0 0.0
    %1519 = vmatprep.subr.mxu0 0.0
    %1520 = vmatpush2.msra.mxu0 0.0
    %1521 = vmatprep.subr.mxu0 0.0
    %1522 = vmatpush2.msra.mxu0 0.0
    %1523 = vmatprep.subr.mxu0 0.0
    %1524 = vmatpush2.msra.mxu0 0.0
    %1525 = vmatprep.subr.mxu0 0.0
    %1526 = vmatpush2.msra.mxu0 0.0
    %1527 = vmatprep.subr.mxu0 0.0
    %1528 = vmatpush2.msra.mxu0 0.0
    %1529 = vmatprep.subr.mxu0 0.0
    %1530 = vmatpush2.msra.mxu0 0.0
    %1531 = vmatprep.subr.mxu0 0.0
    %1532 = vmatpush2.msra.mxu0 0.0
    %1533 = vmatprep.mubr.f32.mxu0 0.0
    %1534 = vmatmul.mubr.f32.gmra.mxu0 %v1333
    %v1535 = vpop.f32.mrf.mxu0
    %v1536 = vadd.f32 %v1295, %v1535
    %v1537 = vpop.f32.mrf.mxu0
    %v1538 = vadd.f32 %v1295, %v1537
    %1539 = vmatprep.mubr.f32.mxu0 0.0
    %1540 = vmatmul.mubr.f32.gmra.mxu0 %v1336
    %v1541 = vpop.f32.mrf.mxu0
    %v1542 = vadd.f32 %v1300, %v1541
    %v1543 = vpop.f32.mrf.mxu0
    %v1544 = vadd.f32 %v1300, %v1543
    %1545 = vmatprep.mubr.f32.mxu0 0.0
    %1546 = vmatmul.mubr.f32.gmra.mxu0 %v1339
    %v1547 = vpop.f32.mrf.mxu0
    %v1548 = vadd.f32 %v1305, %v1547
    %v1549 = vpop.f32.mrf.mxu0
    %v1550 = vadd.f32 %v1305, %v1549
    %1551 = vmatprep.mubr.f32.mxu0 0.0
    %1552 = vmatmul.mubr.f32.gmra.mxu0 %v1342
    %v1553 = vpop.f32.mrf.mxu0
    %v1554 = vadd.f32 %v1310, %v1553
    %v1555 = vpop.f32.mrf.mxu0
    %v1556 = vadd.f32 %v1310, %v1555
    %1557 = vmatprep.mubr.f32.mxu0 0.0
    %1558 = vmatmul.mubr.f32.gmra.mxu0 %v1345
    %v1559 = vpop.f32.mrf.mxu0
    %v1560 = vadd.f32 %v1315, %v1559
    %v1561 = vpop.f32.mrf.mxu0
    %v1562 = vadd.f32 %v1315, %v1561
    %1563 = vmatprep.mubr.f32.mxu0 0.0
    %1564 = vmatmul.mubr.f32.gmra.mxu0 %v1348
    %v1565 = vpop.f32.mrf.mxu0
    %v1566 = vadd.f32 %v1320, %v1565
    %v1567 = vpop.f32.mrf.mxu0
    %v1568 = vadd.f32 %v1320, %v1567
    %1569 = vmatprep.mubr.f32.mxu0 0.0
    %1570 = vmatmul.mubr.f32.gmra.mxu0 %v1351
    %v1571 = vpop.f32.mrf.mxu0
    %v1572 = vadd.f32 %v1325, %v1571
    %v1573 = vpop.f32.mrf.mxu0
    %v1574 = vadd.f32 %v1325, %v1573
    %1575 = vmatprep.mubr.f32.mxu0 0.0
    %1576 = vmatmul.mubr.f32.gmra.mxu0 %v1354
    %v1577 = vpop.f32.mrf.mxu0
    %v1578 = vadd.f32 %v1330, %v1577
    %v1579 = vpop.f32.mrf.mxu0
    %v1580 = vadd.f32 %v1330, %v1579
    %1581 = vdwg.mxu0
    %v1582 = vmax.f32 %v1423, 0.0
    %v1583 = vmax.f32 %v1425, 0.0
    %v1584 = vmax.f32 %v1536, 0.0
    %v1585 = vmax.f32 %v1538, 0.0
    %v1586 = vmax.f32 %v1429, 0.0
    %v1587 = vmax.f32 %v1431, 0.0
    %v1588 = vmax.f32 %v1542, 0.0
    %v1589 = vmax.f32 %v1544, 0.0
    %v1590 = vmax.f32 %v1435, 0.0
    %v1591 = vmax.f32 %v1437, 0.0
    %v1592 = vmax.f32 %v1548, 0.0
    %v1593 = vmax.f32 %v1550, 0.0
    %v1594 = vmax.f32 %v1441, 0.0
    %v1595 = vmax.f32 %v1443, 0.0
    %v1596 = vmax.f32 %v1554, 0.0
    %v1597 = vmax.f32 %v1556, 0.0
    %v1598 = vmax.f32 %v1447, 0.0
    %v1599 = vmax.f32 %v1449, 0.0
    %v1600 = vmax.f32 %v1560, 0.0
    %v1601 = vmax.f32 %v1562, 0.0
    %v1602 = vmax.f32 %v1453, 0.0
    %v1603 = vmax.f32 %v1455, 0.0
    %v1604 = vmax.f32 %v1566, 0.0
    %v1605 = vmax.f32 %v1568, 0.0
    %v1606 = vmax.f32 %v1459, 0.0
    %v1607 = vmax.f32 %v1461, 0.0
    %v1608 = vmax.f32 %v1572, 0.0
    %v1609 = vmax.f32 %v1574, 0.0
    %v1610 = vmax.f32 %v1465, 0.0
    %v1611 = vmax.f32 %v1467, 0.0
    %v1612 = vmax.f32 %v1578, 0.0
    %v1613 = vmax.f32 %v1580, 0.0
    %v1614 = vld [vmem:[%s11] sm:$0x1]
    %v1615 = vld [vmem:[#allocation2] sm:$0x1]
    %1617 = vset.pattern.permute.xlu0 0
    %1618 = vperm.xlu0 %1617, %v1615
    %v1619 = vpop.permute.xlu0 %1618
    %v1621 = vlaneseq
    %v1622 = vshrl.u32 %v1621, 7
    %v1623 = vsub.s32 0, %v1622
    %v1624 = vrot.slane %v1619, %v1623
    %v1626 = vsel %vm317, %v1614, 0
    %1628 = vmatprep.subr.mxu0 0.0
    %1629 = vmatpush1.msra.mxu0 0.0
    %1630 = vmatprep.subr.mxu0 0.0
    %1631 = vmatpush1.msra.mxu0 0.0
    %1632 = vmatprep.subr.mxu0 0.0
    %1633 = vmatpush1.msra.mxu0 0.0
    %1634 = vmatprep.subr.mxu0 0.0
    %1635 = vmatpush1.msra.mxu0 0.0
    %1636 = vmatprep.subr.mxu0 0.0
    %1637 = vmatpush1.msra.mxu0 0.0
    %1638 = vmatprep.subr.mxu0 0.0
    %1639 = vmatpush1.msra.mxu0 0.0
    %1640 = vmatprep.subr.mxu0 0.0
    %1641 = vmatpush1.msra.mxu0 0.0
    %1642 = vmatprep.subr.mxu0 0.0
    %1643 = vmatpush1.msra.mxu0 0.0
    %1644 = vmatprep.subr.mxu0 %v1611
    %1645 = vmatpush1.msra.mxu0 %v1610
    %1646 = vmatprep.subr.mxu0 %v1607
    %1647 = vmatpush1.msra.mxu0 %v1606
    %1648 = vmatprep.subr.mxu0 %v1603
    %1649 = vmatpush1.msra.mxu0 %v1602
    %1650 = vmatprep.subr.mxu0 %v1599
    %1651 = vmatpush1.msra.mxu0 %v1598
    %1652 = vmatprep.subr.mxu0 %v1595
    %1653 = vmatpush1.msra.mxu0 %v1594
    %1654 = vmatprep.subr.mxu0 %v1591
    %1655 = vmatpush1.msra.mxu0 %v1590
    %1656 = vmatprep.subr.mxu0 %v1587
    %1657 = vmatpush1.msra.mxu0 %v1586
    %1658 = vmatprep.subr.mxu0 %v1583
    %1659 = vmatpush1.msra.mxu0 %v1582
    %1660 = vmatprep.subr.mxu0 0.0
    %1661 = vmatpush2.msra.mxu0 0.0
    %1662 = vmatprep.subr.mxu0 0.0
    %1663 = vmatpush2.msra.mxu0 0.0
    %1664 = vmatprep.subr.mxu0 0.0
    %1665 = vmatpush2.msra.mxu0 0.0
    %1666 = vmatprep.subr.mxu0 0.0
    %1667 = vmatpush2.msra.mxu0 0.0
    %1668 = vmatprep.subr.mxu0 0.0
    %1669 = vmatpush2.msra.mxu0 0.0
    %1670 = vmatprep.subr.mxu0 0.0
    %1671 = vmatpush2.msra.mxu0 0.0
    %1672 = vmatprep.subr.mxu0 0.0
    %1673 = vmatpush2.msra.mxu0 0.0
    %1674 = vmatprep.subr.mxu0 0.0
    %1675 = vmatpush2.msra.mxu0 0.0
    %1676 = vmatprep.subr.mxu0 0.0
    %1677 = vmatpush2.msra.mxu0 0.0
    %1678 = vmatprep.subr.mxu0 0.0
    %1679 = vmatpush2.msra.mxu0 0.0
    %1680 = vmatprep.subr.mxu0 0.0
    %1681 = vmatpush2.msra.mxu0 0.0
    %1682 = vmatprep.subr.mxu0 0.0
    %1683 = vmatpush2.msra.mxu0 0.0
    %1684 = vmatprep.subr.mxu0 0.0
    %1685 = vmatpush2.msra.mxu0 0.0
    %1686 = vmatprep.subr.mxu0 0.0
    %1687 = vmatpush2.msra.mxu0 0.0
    %1688 = vmatprep.subr.mxu0 0.0
    %1689 = vmatpush2.msra.mxu0 0.0
    %1690 = vmatprep.subr.mxu0 0.0
    %1691 = vmatpush2.msra.mxu0 0.0
    %1692 = vmatprep.mubr.f32.mxu0 0.0
    %1693 = vmatmul.mubr.f32.gmra.mxu0 %v1626
    %v1694 = vpop.f32.mrf.mxu0
    %v1695 = vadd.f32 %v1624, %v1694
    %v1696 = vpop.f32.mrf.mxu0
    %v1697 = vadd.f32 %v1624, %v1696
    %1698 = vdwg.mxu0
    %1699 = vmatprep.subr.mxu0 0.0
    %1700 = vmatpush1.msra.mxu0 0.0
    %1701 = vmatprep.subr.mxu0 0.0
    %1702 = vmatpush1.msra.mxu0 0.0
    %1703 = vmatprep.subr.mxu0 0.0
    %1704 = vmatpush1.msra.mxu0 0.0
    %1705 = vmatprep.subr.mxu0 0.0
    %1706 = vmatpush1.msra.mxu0 0.0
    %1707 = vmatprep.subr.mxu0 0.0
    %1708 = vmatpush1.msra.mxu0 0.0
    %1709 = vmatprep.subr.mxu0 0.0
    %1710 = vmatpush1.msra.mxu0 0.0
    %1711 = vmatprep.subr.mxu0 0.0
    %1712 = vmatpush1.msra.mxu0 0.0
    %1713 = vmatprep.subr.mxu0 0.0
    %1714 = vmatpush1.msra.mxu0 0.0
    %1715 = vmatprep.subr.mxu0 %v1613
    %1716 = vmatpush1.msra.mxu0 %v1612
    %1717 = vmatprep.subr.mxu0 %v1609
    %1718 = vmatpush1.msra.mxu0 %v1608
    %1719 = vmatprep.subr.mxu0 %v1605
    %1720 = vmatpush1.msra.mxu0 %v1604
    %1721 = vmatprep.subr.mxu0 %v1601
    %1722 = vmatpush1.msra.mxu0 %v1600
    %1723 = vmatprep.subr.mxu0 %v1597
    %1724 = vmatpush1.msra.mxu0 %v1596
    %1725 = vmatprep.subr.mxu0 %v1593
    %1726 = vmatpush1.msra.mxu0 %v1592
    %1727 = vmatprep.subr.mxu0 %v1589
    %1728 = vmatpush1.msra.mxu0 %v1588
    %1729 = vmatprep.subr.mxu0 %v1585
    %1730 = vmatpush1.msra.mxu0 %v1584
    %1731 = vmatprep.subr.mxu0 0.0
    %1732 = vmatpush2.msra.mxu0 0.0
    %1733 = vmatprep.subr.mxu0 0.0
    %1734 = vmatpush2.msra.mxu0 0.0
    %1735 = vmatprep.subr.mxu0 0.0
    %1736 = vmatpush2.msra.mxu0 0.0
    %1737 = vmatprep.subr.mxu0 0.0
    %1738 = vmatpush2.msra.mxu0 0.0
    %1739 = vmatprep.subr.mxu0 0.0
    %1740 = vmatpush2.msra.mxu0 0.0
    %1741 = vmatprep.subr.mxu0 0.0
    %1742 = vmatpush2.msra.mxu0 0.0
    %1743 = vmatprep.subr.mxu0 0.0
    %1744 = vmatpush2.msra.mxu0 0.0
    %1745 = vmatprep.subr.mxu0 0.0
    %1746 = vmatpush2.msra.mxu0 0.0
    %1747 = vmatprep.subr.mxu0 0.0
    %1748 = vmatpush2.msra.mxu0 0.0
    %1749 = vmatprep.subr.mxu0 0.0
    %1750 = vmatpush2.msra.mxu0 0.0
    %1751 = vmatprep.subr.mxu0 0.0
    %1752 = vmatpush2.msra.mxu0 0.0
    %1753 = vmatprep.subr.mxu0 0.0
    %1754 = vmatpush2.msra.mxu0 0.0
    %1755 = vmatprep.subr.mxu0 0.0
    %1756 = vmatpush2.msra.mxu0 0.0
    %1757 = vmatprep.subr.mxu0 0.0
    %1758 = vmatpush2.msra.mxu0 0.0
    %1759 = vmatprep.subr.mxu0 0.0
    %1760 = vmatpush2.msra.mxu0 0.0
    %1761 = vmatprep.subr.mxu0 0.0
    %1762 = vmatpush2.msra.mxu0 0.0
    %1763 = vmatprep.mubr.f32.mxu0 0.0
    %1764 = vmatmul.mubr.f32.gmra.mxu0 %v1626
    %v1765 = vpop.f32.mrf.mxu0
    %v1766 = vadd.f32 %v1624, %v1765
    %v1767 = vpop.f32.mrf.mxu0
    %v1768 = vadd.f32 %v1624, %v1767
    %1769 = vdwg.mxu0
    %v1774 = vcombine.low %v1695, %v1697
    %v1775 = vcombine.low %v1766, %v1768
    %v1777 = vunpack.c.l.s4 1966171168
    %v1778 = vunpack.c.0.s8 %v1777
    %v1779 = vlaneseq
    %v1780 = vshrl.u32 %v1779, 7
    %v1781 = vsub.s32 %v1778, %v1780
    %v1782 = vrot.slane %v1774, %v1781
    %v1784 = vunpack.c.l.s4 1966171168
    %v1785 = vunpack.c.0.s8 %v1784
    %v1786 = vlaneseq
    %v1787 = vshrl.u32 %v1786, 7
    %v1788 = vsub.s32 %v1785, %v1787
    %v1789 = vrot.slane %v1775, %v1788
    %v1790 = vcombine.low %v1782, %v1789
    %v1792 = vunpack.c.l.s4 1966171168
    %v1793 = vunpack.c.0.s8 %v1792
    %v1794 = vlaneseq
    %v1795 = vshrl.u32 %v1794, 7
    %v1796 = vsub.s32 %v1793, %v1795
    %v1797 = vrot.slane %v1790, %v1796
    %v1799 = vlaneseq
    %vm1800 = vcmp.ge.s32.totalorder %v1799, 0
    %vm1801 = vcmp.lt.s32.totalorder %v1799, 512
    %vm1802 = vmand %vm1800, %vm1801
    %1803 = vst.msk [vmem:[#allocation3] sm:$0xf] %vm1802, %v1797
    // Predicated region
    $region54: #{tpu_custom_call.1} parent=1 // pred_check
      _
    $region55: #{tpu_custom_call.1} parent=1 // pred_check_branch
      %1805 = sbr.rel (0) target = $region57
    $region56: #{tpu_custom_call.1} parent=1 // pred_region
      %s1807 = ssub.s32 64, 64
      %1808 = vsyncadd [#allocation4], %s1807
      %s1810 = sshll.u32 [#allocation3], 4
      %s1811 = int_to_ptr.vmem [resolvable:$true] %s1810
      %1813 = dma.vmem_to_hbm [thread:$0]  %s1811, 64, %s13, [#allocation4]
    $region57: #{tpu_custom_call.1} parent=1 // pred_fallthru
      _
    // Predicated region
    $region58: #{tpu_custom_call.1} parent=1 // pred_check
      _
    $region59: #{tpu_custom_call.1} parent=1 // pred_check_branch
      %1815 = sbr.rel (0) target = $region61
    $region60: #{tpu_custom_call.1} parent=1 // pred_region
      %1816 = dma.done [#allocation4], 64
    $region61: #{tpu_custom_call.1} parent=1 // pred_fallthru
      _
    %1817 = vsyncpa [#allocation4], 1

</llo_original>
